<compile_context>
chip_gen: v7x
topology: tpu7x:2x2x1
jax: 0.10.0
libtpu: 0.0.40
codegen_flags: <defaults>
</compile_context>

<pallas_src>
import math
from functools import partial

import jax
import jax.numpy as jnp
from jax import lax
from jax.experimental import pallas as pl
from jax.experimental.pallas import tpu as pltpu

# tap ordering k = (dy+1)*3 + (dx+1)  (== ky*3 + kx of the 3x3 kernel)
_OFFSETS = [(dy, dx) for dy in (-1, 0, 1) for dx in (-1, 0, 1)]


def _token_learner_kernel(x_ref, ft_ref, g_ref, b_ref, m_ref, seg_ref,
                          w1_ref, w2_ref, o_ref, *, TB, N, W, eps):
    NTOT = TB * N
    C = x_ref.shape[0]

    x = x_ref[...]                     # (C, TB*N) f32
    seg = seg_ref[...]                 # (TB, TB*N) f32 per-image lane indicator
    masks = m_ref[...]                 # (9, TB*N) f32 'SAME' zero-padding validity

    # ---- LayerNorm([C,H,W]) per image: single-pass sum / sum-of-squares ----
    colsum = jnp.sum(x, axis=0, keepdims=True)          # (1, TB*N) sublane reduce
    colsq = jnp.sum(x * x, axis=0, keepdims=True)       # (1, TB*N)
    stats = jnp.concatenate([colsum, colsq], axis=0)    # (2, TB*N)
    # per-image reduction over that image's N lanes via one small MXU dot
    bstats = lax.dot_general(stats, seg, (((1,), (1,)), ((), ())),
                             preferred_element_type=jnp.float32)      # (2, TB)
    inv_cn = 1.0 / (C * N)
    mean_b = bstats[0:1, :] * inv_cn                                  # (1, TB)
    rinv_b = lax.rsqrt(bstats[1:2, :] * inv_cn - mean_b * mean_b + eps)
    # broadcast per-image (mean, rsqrt(var+eps)) back onto the lanes
    lane_stats = jnp.dot(jnp.concatenate([mean_b, rinv_b], axis=0), seg,
                         preferred_element_type=jnp.float32)          # (2, TB*N)
    xn = (x - lane_stats[0:1, :]) * lane_stats[1:2, :] * g_ref[...] + b_ref[...]

    # ---- 3x3 zero-padded conv: 9 rolled+masked taps fused into ONE matmul ----
    def conv3x3(inp, w_ref_):
        taps = []
        for k, (dy, dx) in enumerate(_OFFSETS):
            off = dy * W + dx
            rolled = inp if off == 0 else pltpu.roll(inp, shift=(-off) % NTOT, axis=1)
            taps.append(rolled * masks[k:k + 1, :])      # f32 masking (zero padding)
        stacked = jnp.concatenate(taps, axis=0)          # (9*C_in, TB*N) f32
        # bf16 MXU operands (weights already bf16), f32 accumulation
        return jnp.dot(w_ref_[...], stacked.astype(jnp.bfloat16),
                       preferred_element_type=jnp.float32)            # (S, TB*N)

    sel = conv3x3(xn, w1_ref)          # conv_initial
    sel = conv3x3(sel, w2_ref)         # conv_end
    attn = jax.nn.sigmoid(sel)         # (S, TB*N) f32

    # ---- per-image sum pooling: out[t,s,c] = sum_n attn[s,tN+n] * featT[c,tN+n] ----
    ft = ft_ref[...]                   # (C, TB*N) f32
    for t in range(TB):                # static unrolled loop over the TB stacked images
        a_t = attn[:, t * N:(t + 1) * N]              # (S, N) lane-dense
        f_t = ft[:, t * N:(t + 1) * N]                # (C, N) lane-dense
        o_ref[t, :, :] = lax.dot_general(a_t, f_t, (((1,), (1,)), ((), ())),
                                         preferred_element_type=jnp.float32)


def token_learner(x, gamma, beta, w1, w2):
    """x: (B, C, H, W); gamma/beta: (C, H, W); w1: (S, C, 3, 3); w2: (S, S, 3, 3)."""
    B, C, H, W = x.shape
    S = w1.shape[0]
    N = H * W

    # batch tile: stack TB images along the lane axis per grid step
    TB = 1
    for cand in range(min(B, 8), 0, -1):
        if B % cand == 0:
            TB = cand
            break
    G = B // TB
    NTOT = TB * N

    xf = x.astype(jnp.float32)
    # channel-major, spatially flattened, TB images stacked along lanes
    x_stk = (xf.reshape(B, C, N)
               .reshape(G, TB, C, N)
               .transpose(0, 2, 1, 3)
               .reshape(G, C, NTOT))
    # feat = raw torch.reshape(inputs, (B, H*W, C)); pass its transpose (lane-dense)
    featT = jnp.swapaxes(xf.reshape(B, N, C), 1, 2)                   # (B, C, N)
    ft_stk = (featT.reshape(G, TB, C, N)
                   .transpose(0, 2, 1, 3)
                   .reshape(G, C, NTOT))

    g_t = jnp.tile(gamma.reshape(C, N).astype(jnp.float32), (1, TB))  # (C, NTOT)
    b_t = jnp.tile(beta.reshape(C, N).astype(jnp.float32), (1, TB))

    # 9 'SAME' zero-padding validity masks (one per tap), tiled over TB images
    n_idx = jnp.arange(N)
    y_idx, x_idx = n_idx // W, n_idx % W
    rows = []
    for dy, dx in _OFFSETS:
        rows.append((y_idx + dy >= 0) & (y_idx + dy < H) &
                    (x_idx + dx >= 0) & (x_idx + dx < W))
    masks = jnp.tile(jnp.stack(rows).astype(jnp.float32), (1, TB))    # (9, NTOT)

    # per-image lane-segment indicator for the LayerNorm reduce / broadcast
    seg = (jnp.arange(NTOT)[None, :] // N ==
           jnp.arange(TB)[:, None]).astype(jnp.float32)               # (TB, NTOT)

    # stacked conv weights: tap k = ky*3+kx occupies columns [k*C_in, (k+1)*C_in)
    w1_stk = jnp.transpose(w1, (0, 2, 3, 1)).reshape(S, 9 * C).astype(jnp.bfloat16)
    w2_stk = jnp.transpose(w2, (0, 2, 3, 1)).reshape(S, 9 * S).astype(jnp.bfloat16)

    kernel = partial(_token_learner_kernel, TB=TB, N=N, W=W, eps=1e-5)

    cost = pl.CostEstimate(
        flops=int(2 * B * N * (9 * C * S + 9 * S * S + S * C) + 8 * B * C * N),
        transcendentals=int(B * S * N),
        bytes_accessed=int(4 * (2 * B * C * N + 2 * C * N + (9 + TB) * NTOT
                                + B * S * C) + 2 * 9 * S * (C + S)))

    return pl.pallas_call(
        kernel,
        out_shape=jax.ShapeDtypeStruct((B, S, C), jnp.float32),
        grid_spec=pltpu.PrefetchScalarGridSpec(
            num_scalar_prefetch=0,
            grid=(G,),
            in_specs=[
                pl.BlockSpec((None, C, NTOT), lambda g: (g, 0, 0)),   # x (stacked)
                pl.BlockSpec((None, C, NTOT), lambda g: (g, 0, 0)),   # featT (stacked)
                pl.BlockSpec((C, NTOT), lambda g: (0, 0)),            # layernorm gamma
                pl.BlockSpec((C, NTOT), lambda g: (0, 0)),            # layernorm beta
                pl.BlockSpec((9, NTOT), lambda g: (0, 0)),            # padding masks
                pl.BlockSpec((TB, NTOT), lambda g: (0, 0)),           # segment indicator
                pl.BlockSpec((S, 9 * C), lambda g: (0, 0)),           # conv_initial W (bf16)
                pl.BlockSpec((S, 9 * S), lambda g: (0, 0)),           # conv_end W (bf16)
            ],
            out_specs=pl.BlockSpec((TB, S, C), lambda g: (g, 0, 0)),
        ),
        compiler_params=pltpu.CompilerParams(
            dimension_semantics=("parallel",)),
        cost_estimate=cost,
    )(x_stk, ft_stk, g_t, b_t, masks, seg, w1_stk, w2_stk)


def token_learner_ref(x, gamma, beta, w1, w2):
    """Pure-JAX reference mirroring the PyTorch forward exactly (f32, HIGHEST)."""
    B, C, H, W = x.shape
    S = w1.shape[0]
    mean = jnp.mean(x.reshape(B, -1), axis=1).reshape(B, 1, 1, 1)
    var = jnp.mean(((x - mean) ** 2).reshape(B, -1), axis=1).reshape(B, 1, 1, 1)
    xn = (x - mean) / jnp.sqrt(var + 1e-5) * gamma[None] + beta[None]
    dn = ('NCHW', 'OIHW', 'NCHW')
    c1 = lax.conv_general_dilated(xn, w1, (1, 1), 'SAME', dimension_numbers=dn,
                                  precision=lax.Precision.HIGHEST)
    c2 = lax.conv_general_dilated(c1, w2, (1, 1), 'SAME', dimension_numbers=dn,
                                  precision=lax.Precision.HIGHEST)
    attn = jax.nn.sigmoid(c2.reshape(B, S, H * W))
    feat = x.reshape(B, H * W, C)           # same raw reshape as torch.reshape
    return jnp.einsum('bsn,bnc->bsc', attn, feat,
                      precision=lax.Precision.HIGHEST)


if __name__ == "__main__":
    B, C, H, S = 2, 4, 16, 8                # inputs: [bs, c, h, h], S tokens
    key = jax.random.PRNGKey(0)
    kx, kg, kb, k1, k2 = jax.random.split(key, 5)

    x = jax.random.normal(kx, (B, C, H, H), jnp.float32)
    gamma = 1.0 + 0.1 * jax.random.normal(kg, (C, H, H), jnp.float32)
    beta = 0.1 * jax.random.normal(kb, (C, H, H), jnp.float32)
    w1 = jax.random.normal(k1, (S, C, 3, 3), jnp.float32) / math.sqrt(C * 9)
    w2 = jax.random.normal(k2, (S, S, 3, 3), jnp.float32) / math.sqrt(S * 9)

    out = jax.block_until_ready(token_learner(x, gamma, beta, w1, w2))
    ref = token_learner_ref(x, gamma, beta, w1, w2)

    assert out.shape == (B, S, C), out.shape
    # atol loosened slightly vs the pure-f32 version: conv matmul operands are bf16
    # (f32 accumulation) to use the native MXU path on v6e/v7x.
    if not jnp.allclose(out, ref, rtol=5e-2, atol=1e-1):
        raise AssertionError(
            f"mismatch vs reference, max abs err = {jnp.max(jnp.abs(out - ref))}")
    print("KERNEL_OK")
</pallas_src>

<mosaic_0001>
module attributes {stable_mosaic.version = 11 : i64} {
  func.func @_token_learner_kernel(%arg0: i32, %arg1: memref<1x4x512xf32, #tpu.memory_space<vmem>>, %arg2: memref<1x4x512xf32, #tpu.memory_space<vmem>>, %arg3: memref<4x512xf32, #tpu.memory_space<vmem>>, %arg4: memref<4x512xf32, #tpu.memory_space<vmem>>, %arg5: memref<9x512xf32, #tpu.memory_space<vmem>>, %arg6: memref<2x512xf32, #tpu.memory_space<vmem>>, %arg7: memref<8x36xbf16, #tpu.memory_space<vmem>>, %arg8: memref<8x72xbf16, #tpu.memory_space<vmem>>, %arg9: memref<2x8x4xf32, #tpu.memory_space<vmem>>) attributes {dimension_semantics = [#tpu.dimension_semantics<parallel>], iteration_bounds = array<i64: 1>, scalar_prefetch = 0 : i64, scratch_operands = 0 : i64, tpu.core_type = #tpu.core_type<tc>, window_params = [{transform_indices = @transform_0, window_bounds = array<i64: 1, 4, 512>}, {transform_indices = @transform_1, window_bounds = array<i64: 1, 4, 512>}, {pipeline_mode = #tpu.pipeline_mode<synchronous>, transform_indices = @transform_2, window_bounds = array<i64: 4, 512>}, {pipeline_mode = #tpu.pipeline_mode<synchronous>, transform_indices = @transform_3, window_bounds = array<i64: 4, 512>}, {pipeline_mode = #tpu.pipeline_mode<synchronous>, transform_indices = @transform_4, window_bounds = array<i64: 9, 512>}, {pipeline_mode = #tpu.pipeline_mode<synchronous>, transform_indices = @transform_5, window_bounds = array<i64: 2, 512>}, {pipeline_mode = #tpu.pipeline_mode<synchronous>, transform_indices = @transform_6, window_bounds = array<i64: 8, 36>}, {pipeline_mode = #tpu.pipeline_mode<synchronous>, transform_indices = @transform_7, window_bounds = array<i64: 8, 72>}, {transform_indices = @transform_8, window_bounds = array<i64: 2, 8, 4>}]} {
    %c0 = arith.constant 0 : index
    %c0_0 = arith.constant 0 : index
    %c0_1 = arith.constant 0 : index
    %0 = vector.load %arg1[%c0, %c0_0, %c0_1] : memref<1x4x512xf32, #tpu.memory_space<vmem>>, vector<1x4x512xf32>
    %1 = vector.shape_cast %0 : vector<1x4x512xf32> to vector<4x512xf32>
    %c0_2 = arith.constant 0 : index
    %c0_3 = arith.constant 0 : index
    %2 = vector.load %arg6[%c0_2, %c0_3] : memref<2x512xf32, #tpu.memory_space<vmem>>, vector<2x512xf32>
    %c0_4 = arith.constant 0 : index
    %c0_5 = arith.constant 0 : index
    %3 = vector.load %arg5[%c0_4, %c0_5] : memref<9x512xf32, #tpu.memory_space<vmem>>, vector<9x512xf32>
    %cst = arith.constant dense<0.000000e+00> : vector<512xf32>
    %4 = vector.multi_reduction <add>, %1, %cst [0] : vector<4x512xf32> to vector<512xf32>
    %5 = vector.shape_cast %4 : vector<512xf32> to vector<1x512xf32>
    %6 = arith.mulf %1, %1 : vector<4x512xf32>
    %cst_6 = arith.constant dense<0.000000e+00> : vector<512xf32>
    %7 = vector.multi_reduction <add>, %6, %cst_6 [0] : vector<4x512xf32> to vector<512xf32>
    %8 = vector.shape_cast %7 : vector<512xf32> to vector<1x512xf32>
    %9 = tpu.concatenate %5, %8 in 0 : vector<1x512xf32>, vector<1x512xf32> -> vector<2x512xf32>
    %cst_7 = arith.constant dense<0.000000e+00> : vector<2x2xf32>
    %10 = tpu.matmul %9, %2, %cst_7 {dimension_numbers = #tpu.dot_dimension_numbers<[1], [1], [0], [0], [0, 0, 1, 0], [], []>} : vector<2x512xf32>, vector<2x512xf32>, vector<2x2xf32> -> vector<2x2xf32>
    %11 = vector.extract_strided_slice %10 {offsets = [0, 0], sizes = [1, 2], strides = [1, 1]} : vector<2x2xf32> to vector<1x2xf32>
    %cst_8 = arith.constant 9.765625E-4 : f32
    %12 = vector.broadcast %cst_8 : f32 to vector<1x2xf32>
    %13 = arith.mulf %11, %12 : vector<1x2xf32>
    %14 = vector.extract_strided_slice %10 {offsets = [1, 0], sizes = [1, 2], strides = [1, 1]} : vector<2x2xf32> to vector<1x2xf32>
    %cst_9 = arith.constant 9.765625E-4 : f32
    %15 = vector.broadcast %cst_9 : f32 to vector<1x2xf32>
    %16 = arith.mulf %14, %15 : vector<1x2xf32>
    %17 = arith.mulf %13, %13 : vector<1x2xf32>
    %18 = arith.subf %16, %17 : vector<1x2xf32>
    %cst_10 = arith.constant 9.99999974E-6 : f32
    %19 = vector.broadcast %cst_10 : f32 to vector<1x2xf32>
    %20 = arith.addf %18, %19 : vector<1x2xf32>
    %21 = math.rsqrt %20 : vector<1x2xf32>
    %22 = tpu.concatenate %13, %21 in 0 : vector<1x2xf32>, vector<1x2xf32> -> vector<2x2xf32>
    %cst_11 = arith.constant dense<0.000000e+00> : vector<2x512xf32>
    %23 = tpu.matmul %22, %2, %cst_11 {dimension_numbers = #tpu.dot_dimension_numbers<[1], [0], [0], [1], [0, 0, 1, 1], [], []>} : vector<2x2xf32>, vector<2x512xf32>, vector<2x512xf32> -> vector<2x512xf32>
    %24 = vector.extract_strided_slice %23 {offsets = [0, 0], sizes = [1, 512], strides = [1, 1]} : vector<2x512xf32> to vector<1x512xf32>
    %25 = vector.broadcast %24 : vector<1x512xf32> to vector<4x512xf32>
    %26 = arith.subf %1, %25 : vector<4x512xf32>
    %27 = vector.extract_strided_slice %23 {offsets = [1, 0], sizes = [1, 512], strides = [1, 1]} : vector<2x512xf32> to vector<1x512xf32>
    %28 = vector.broadcast %27 : vector<1x512xf32> to vector<4x512xf32>
    %29 = arith.mulf %26, %28 : vector<4x512xf32>
    %c0_12 = arith.constant 0 : index
    %c0_13 = arith.constant 0 : index
    %30 = vector.load %arg3[%c0_12, %c0_13] : memref<4x512xf32, #tpu.memory_space<vmem>>, vector<4x512xf32>
    %31 = arith.mulf %29, %30 : vector<4x512xf32>
    %c0_14 = arith.constant 0 : index
    %c0_15 = arith.constant 0 : index
    %32 = vector.load %arg4[%c0_14, %c0_15] : memref<4x512xf32, #tpu.memory_space<vmem>>, vector<4x512xf32>
    %33 = arith.addf %31, %32 : vector<4x512xf32>
    %c17_i32 = arith.constant 17 : i32
    %34 = tpu.dynamic_rotate %33 by %c17_i32 dim 1 : vector<4x512xf32>, i32 -> vector<4x512xf32>
    %35 = vector.extract_strided_slice %3 {offsets = [0, 0], sizes = [1, 512], strides = [1, 1]} : vector<9x512xf32> to vector<1x512xf32>
    %36 = vector.broadcast %35 : vector<1x512xf32> to vector<4x512xf32>
    %37 = arith.mulf %34, %36 : vector<4x512xf32>
    %c16_i32 = arith.constant 16 : i32
    %38 = tpu.dynamic_rotate %33 by %c16_i32 dim 1 : vector<4x512xf32>, i32 -> vector<4x512xf32>
    %39 = vector.extract_strided_slice %3 {offsets = [1, 0], sizes = [1, 512], strides = [1, 1]} : vector<9x512xf32> to vector<1x512xf32>
    %40 = vector.broadcast %39 : vector<1x512xf32> to vector<4x512xf32>
    %41 = arith.mulf %38, %40 : vector<4x512xf32>
    %c15_i32 = arith.constant 15 : i32
    %42 = tpu.dynamic_rotate %33 by %c15_i32 dim 1 : vector<4x512xf32>, i32 -> vector<4x512xf32>
    %43 = vector.extract_strided_slice %3 {offsets = [2, 0], sizes = [1, 512], strides = [1, 1]} : vector<9x512xf32> to vector<1x512xf32>
    %44 = vector.broadcast %43 : vector<1x512xf32> to vector<4x512xf32>
    %45 = arith.mulf %42, %44 : vector<4x512xf32>
    %c1_i32 = arith.constant 1 : i32
    %46 = tpu.dynamic_rotate %33 by %c1_i32 dim 1 : vector<4x512xf32>, i32 -> vector<4x512xf32>
    %47 = vector.extract_strided_slice %3 {offsets = [3, 0], sizes = [1, 512], strides = [1, 1]} : vector<9x512xf32> to vector<1x512xf32>
    %48 = vector.broadcast %47 : vector<1x512xf32> to vector<4x512xf32>
    %49 = arith.mulf %46, %48 : vector<4x512xf32>
    %50 = vector.extract_strided_slice %3 {offsets = [4, 0], sizes = [1, 512], strides = [1, 1]} : vector<9x512xf32> to vector<1x512xf32>
    %51 = vector.broadcast %50 : vector<1x512xf32> to vector<4x512xf32>
    %52 = arith.mulf %33, %51 : vector<4x512xf32>
    %c511_i32 = arith.constant 511 : i32
    %53 = tpu.dynamic_rotate %33 by %c511_i32 dim 1 : vector<4x512xf32>, i32 -> vector<4x512xf32>
    %54 = vector.extract_strided_slice %3 {offsets = [5, 0], sizes = [1, 512], strides = [1, 1]} : vector<9x512xf32> to vector<1x512xf32>
    %55 = vector.broadcast %54 : vector<1x512xf32> to vector<4x512xf32>
    %56 = arith.mulf %53, %55 : vector<4x512xf32>
    %c497_i32 = arith.constant 497 : i32
    %57 = tpu.dynamic_rotate %33 by %c497_i32 dim 1 : vector<4x512xf32>, i32 -> vector<4x512xf32>
    %58 = vector.extract_strided_slice %3 {offsets = [6, 0], sizes = [1, 512], strides = [1, 1]} : vector<9x512xf32> to vector<1x512xf32>
    %59 = vector.broadcast %58 : vector<1x512xf32> to vector<4x512xf32>
    %60 = arith.mulf %57, %59 : vector<4x512xf32>
    %c496_i32 = arith.constant 496 : i32
    %61 = tpu.dynamic_rotate %33 by %c496_i32 dim 1 : vector<4x512xf32>, i32 -> vector<4x512xf32>
    %62 = vector.extract_strided_slice %3 {offsets = [7, 0], sizes = [1, 512], strides = [1, 1]} : vector<9x512xf32> to vector<1x512xf32>
    %63 = vector.broadcast %62 : vector<1x512xf32> to vector<4x512xf32>
    %64 = arith.mulf %61, %63 : vector<4x512xf32>
    %c495_i32 = arith.constant 495 : i32
    %65 = tpu.dynamic_rotate %33 by %c495_i32 dim 1 : vector<4x512xf32>, i32 -> vector<4x512xf32>
    %66 = vector.extract_strided_slice %3 {offsets = [8, 0], sizes = [1, 512], strides = [1, 1]} : vector<9x512xf32> to vector<1x512xf32>
    %67 = vector.broadcast %66 : vector<1x512xf32> to vector<4x512xf32>
    %68 = arith.mulf %65, %67 : vector<4x512xf32>
    %69 = tpu.concatenate %37, %41, %45, %49, %52, %56, %60, %64, %68 in 0 : vector<4x512xf32>, vector<4x512xf32>, vector<4x512xf32>, vector<4x512xf32>, vector<4x512xf32>, vector<4x512xf32>, vector<4x512xf32>, vector<4x512xf32>, vector<4x512xf32> -> vector<36x512xf32>
    %c0_16 = arith.constant 0 : index
    %c0_17 = arith.constant 0 : index
    %70 = vector.load %arg7[%c0_16, %c0_17] : memref<8x36xbf16, #tpu.memory_space<vmem>>, vector<8x36xbf16>
    %71 = arith.truncf %69 : vector<36x512xf32> to vector<36x512xbf16>
    %cst_18 = arith.constant dense<0.000000e+00> : vector<8x512xf32>
    %72 = tpu.matmul %70, %71, %cst_18 {dimension_numbers = #tpu.dot_dimension_numbers<[1], [0], [0], [1], [0, 0, 1, 1], [], []>} : vector<8x36xbf16>, vector<36x512xbf16>, vector<8x512xf32> -> vector<8x512xf32>
    %c17_i32_19 = arith.constant 17 : i32
    %73 = tpu.dynamic_rotate %72 by %c17_i32_19 dim 1 : vector<8x512xf32>, i32 -> vector<8x512xf32>
    %74 = vector.extract_strided_slice %3 {offsets = [0, 0], sizes = [1, 512], strides = [1, 1]} : vector<9x512xf32> to vector<1x512xf32>
    %75 = vector.broadcast %74 : vector<1x512xf32> to vector<8x512xf32>
    %76 = arith.mulf %73, %75 : vector<8x512xf32>
    %c16_i32_20 = arith.constant 16 : i32
    %77 = tpu.dynamic_rotate %72 by %c16_i32_20 dim 1 : vector<8x512xf32>, i32 -> vector<8x512xf32>
    %78 = vector.extract_strided_slice %3 {offsets = [1, 0], sizes = [1, 512], strides = [1, 1]} : vector<9x512xf32> to vector<1x512xf32>
    %79 = vector.broadcast %78 : vector<1x512xf32> to vector<8x512xf32>
    %80 = arith.mulf %77, %79 : vector<8x512xf32>
    %c15_i32_21 = arith.constant 15 : i32
    %81 = tpu.dynamic_rotate %72 by %c15_i32_21 dim 1 : vector<8x512xf32>, i32 -> vector<8x512xf32>
    %82 = vector.extract_strided_slice %3 {offsets = [2, 0], sizes = [1, 512], strides = [1, 1]} : vector<9x512xf32> to vector<1x512xf32>
    %83 = vector.broadcast %82 : vector<1x512xf32> to vector<8x512xf32>
    %84 = arith.mulf %81, %83 : vector<8x512xf32>
    %c1_i32_22 = arith.constant 1 : i32
    %85 = tpu.dynamic_rotate %72 by %c1_i32_22 dim 1 : vector<8x512xf32>, i32 -> vector<8x512xf32>
    %86 = vector.extract_strided_slice %3 {offsets = [3, 0], sizes = [1, 512], strides = [1, 1]} : vector<9x512xf32> to vector<1x512xf32>
    %87 = vector.broadcast %86 : vector<1x512xf32> to vector<8x512xf32>
    %88 = arith.mulf %85, %87 : vector<8x512xf32>
    %89 = vector.extract_strided_slice %3 {offsets = [4, 0], sizes = [1, 512], strides = [1, 1]} : vector<9x512xf32> to vector<1x512xf32>
    %90 = vector.broadcast %89 : vector<1x512xf32> to vector<8x512xf32>
    %91 = arith.mulf %72, %90 : vector<8x512xf32>
    %c511_i32_23 = arith.constant 511 : i32
    %92 = tpu.dynamic_rotate %72 by %c511_i32_23 dim 1 : vector<8x512xf32>, i32 -> vector<8x512xf32>
    %93 = vector.extract_strided_slice %3 {offsets = [5, 0], sizes = [1, 512], strides = [1, 1]} : vector<9x512xf32> to vector<1x512xf32>
    %94 = vector.broadcast %93 : vector<1x512xf32> to vector<8x512xf32>
    %95 = arith.mulf %92, %94 : vector<8x512xf32>
    %c497_i32_24 = arith.constant 497 : i32
    %96 = tpu.dynamic_rotate %72 by %c497_i32_24 dim 1 : vector<8x512xf32>, i32 -> vector<8x512xf32>
    %97 = vector.extract_strided_slice %3 {offsets = [6, 0], sizes = [1, 512], strides = [1, 1]} : vector<9x512xf32> to vector<1x512xf32>
    %98 = vector.broadcast %97 : vector<1x512xf32> to vector<8x512xf32>
    %99 = arith.mulf %96, %98 : vector<8x512xf32>
    %c496_i32_25 = arith.constant 496 : i32
    %100 = tpu.dynamic_rotate %72 by %c496_i32_25 dim 1 : vector<8x512xf32>, i32 -> vector<8x512xf32>
    %101 = vector.extract_strided_slice %3 {offsets = [7, 0], sizes = [1, 512], strides = [1, 1]} : vector<9x512xf32> to vector<1x512xf32>
    %102 = vector.broadcast %101 : vector<1x512xf32> to vector<8x512xf32>
    %103 = arith.mulf %100, %102 : vector<8x512xf32>
    %c495_i32_26 = arith.constant 495 : i32
    %104 = tpu.dynamic_rotate %72 by %c495_i32_26 dim 1 : vector<8x512xf32>, i32 -> vector<8x512xf32>
    %105 = vector.extract_strided_slice %3 {offsets = [8, 0], sizes = [1, 512], strides = [1, 1]} : vector<9x512xf32> to vector<1x512xf32>
    %106 = vector.broadcast %105 : vector<1x512xf32> to vector<8x512xf32>
    %107 = arith.mulf %104, %106 : vector<8x512xf32>
    %108 = tpu.concatenate %76, %80, %84, %88, %91, %95, %99, %103, %107 in 0 : vector<8x512xf32>, vector<8x512xf32>, vector<8x512xf32>, vector<8x512xf32>, vector<8x512xf32>, vector<8x512xf32>, vector<8x512xf32>, vector<8x512xf32>, vector<8x512xf32> -> vector<72x512xf32>
    %c0_27 = arith.constant 0 : index
    %c0_28 = arith.constant 0 : index
    %109 = vector.load %arg8[%c0_27, %c0_28] : memref<8x72xbf16, #tpu.memory_space<vmem>>, vector<8x72xbf16>
    %110 = arith.truncf %108 : vector<72x512xf32> to vector<72x512xbf16>
    %cst_29 = arith.constant dense<0.000000e+00> : vector<8x512xf32>
    %111 = tpu.matmul %109, %110, %cst_29 {dimension_numbers = #tpu.dot_dimension_numbers<[1], [0], [0], [1], [0, 0, 1, 1], [], []>} : vector<8x72xbf16>, vector<72x512xbf16>, vector<8x512xf32> -> vector<8x512xf32>
    %112 = arith.negf %111 : vector<8x512xf32>
    %113 = math.exp %112 : vector<8x512xf32>
    %cst_30 = arith.constant 1.000000e+00 : f32
    %114 = vector.broadcast %cst_30 : f32 to vector<8x512xf32>
    %115 = arith.addf %114, %113 : vector<8x512xf32>
    %116 = arith.divf %114, %115 : vector<8x512xf32>
    %c0_31 = arith.constant 0 : index
    %c0_32 = arith.constant 0 : index
    %c0_33 = arith.constant 0 : index
    %117 = vector.load %arg2[%c0_31, %c0_32, %c0_33] : memref<1x4x512xf32, #tpu.memory_space<vmem>>, vector<1x4x512xf32>
    %118 = vector.shape_cast %117 : vector<1x4x512xf32> to vector<4x512xf32>
    %119 = vector.extract_strided_slice %116 {offsets = [0, 0], sizes = [8, 256], strides = [1, 1]} : vector<8x512xf32> to vector<8x256xf32>
    %120 = vector.extract_strided_slice %118 {offsets = [0, 0], sizes = [4, 256], strides = [1, 1]} : vector<4x512xf32> to vector<4x256xf32>
    %cst_34 = arith.constant dense<0.000000e+00> : vector<8x4xf32>
    %121 = tpu.matmul %119, %120, %cst_34 {dimension_numbers = #tpu.dot_dimension_numbers<[1], [1], [0], [0], [0, 0, 1, 0], [], []>} : vector<8x256xf32>, vector<4x256xf32>, vector<8x4xf32> -> vector<8x4xf32>
    %c0_35 = arith.constant 0 : index
    %c0_36 = arith.constant 0 : index
    %c0_37 = arith.constant 0 : index
    %122 = vector.load %arg9[%c0_35, %c0_36, %c0_37] : memref<2x8x4xf32, #tpu.memory_space<vmem>>, vector<1x8x4xf32>
    %123 = vector.shape_cast %122 : vector<1x8x4xf32> to vector<8x4xf32>
    %124 = vector.shape_cast %121 : vector<8x4xf32> to vector<1x8x4xf32>
    tpu.vector_store %arg9[%c0_35, %c0_36, %c0_37], %124 {strides = array<i32>} : memref<2x8x4xf32, #tpu.memory_space<vmem>>, vector<1x8x4xf32>,
    %125 = vector.extract_strided_slice %116 {offsets = [0, 256], sizes = [8, 256], strides = [1, 1]} : vector<8x512xf32> to vector<8x256xf32>
    %126 = vector.extract_strided_slice %118 {offsets = [0, 256], sizes = [4, 256], strides = [1, 1]} : vector<4x512xf32> to vector<4x256xf32>
    %cst_38 = arith.constant dense<0.000000e+00> : vector<8x4xf32>
    %127 = tpu.matmul %125, %126, %cst_38 {dimension_numbers = #tpu.dot_dimension_numbers<[1], [1], [0], [0], [0, 0, 1, 0], [], []>} : vector<8x256xf32>, vector<4x256xf32>, vector<8x4xf32> -> vector<8x4xf32>
    %c1 = arith.constant 1 : index
    %c0_39 = arith.constant 0 : index
    %c0_40 = arith.constant 0 : index
    %128 = vector.load %arg9[%c1, %c0_39, %c0_40] : memref<2x8x4xf32, #tpu.memory_space<vmem>>, vector<1x8x4xf32>
    %129 = vector.shape_cast %128 : vector<1x8x4xf32> to vector<8x4xf32>
    %130 = vector.shape_cast %127 : vector<8x4xf32> to vector<1x8x4xf32>
    tpu.vector_store %arg9[%c1, %c0_39, %c0_40], %130 {strides = array<i32>} : memref<2x8x4xf32, #tpu.memory_space<vmem>>, vector<1x8x4xf32>,
    return
  }
  func.func @transform_0(%arg0: i32) -> (i32, i32, i32) {
    %c0_i32 = arith.constant 0 : i32
    %c0_i32_0 = arith.constant 0 : i32
    %c0_i32_1 = arith.constant 0 : i32
    return %arg0, %c0_i32, %c0_i32_0 : i32, i32, i32
  }
  func.func @transform_1(%arg0: i32) -> (i32, i32, i32) {
    %c0_i32 = arith.constant 0 : i32
    %c0_i32_0 = arith.constant 0 : i32
    %c0_i32_1 = arith.constant 0 : i32
    return %arg0, %c0_i32, %c0_i32_0 : i32, i32, i32
  }
  func.func @transform_2(%arg0: i32) -> (i32, i32) {
    %c0_i32 = arith.constant 0 : i32
    %c0_i32_0 = arith.constant 0 : i32
    %c0_i32_1 = arith.constant 0 : i32
    return %c0_i32, %c0_i32_0 : i32, i32
  }
  func.func @transform_3(%arg0: i32) -> (i32, i32) {
    %c0_i32 = arith.constant 0 : i32
    %c0_i32_0 = arith.constant 0 : i32
    %c0_i32_1 = arith.constant 0 : i32
    return %c0_i32, %c0_i32_0 : i32, i32
  }
  func.func @transform_4(%arg0: i32) -> (i32, i32) {
    %c0_i32 = arith.constant 0 : i32
    %c0_i32_0 = arith.constant 0 : i32
    %c0_i32_1 = arith.constant 0 : i32
    return %c0_i32, %c0_i32_0 : i32, i32
  }
  func.func @transform_5(%arg0: i32) -> (i32, i32) {
    %c0_i32 = arith.constant 0 : i32
    %c0_i32_0 = arith.constant 0 : i32
    %c0_i32_1 = arith.constant 0 : i32
    return %c0_i32, %c0_i32_0 : i32, i32
  }
  func.func @transform_6(%arg0: i32) -> (i32, i32) {
    %c0_i32 = arith.constant 0 : i32
    %c0_i32_0 = arith.constant 0 : i32
    %c0_i32_1 = arith.constant 0 : i32
    return %c0_i32, %c0_i32_0 : i32, i32
  }
  func.func @transform_7(%arg0: i32) -> (i32, i32) {
    %c0_i32 = arith.constant 0 : i32
    %c0_i32_0 = arith.constant 0 : i32
    %c0_i32_1 = arith.constant 0 : i32
    return %c0_i32, %c0_i32_0 : i32, i32
  }
  func.func @transform_8(%arg0: i32) -> (i32, i32, i32) {
    %c0_i32 = arith.constant 0 : i32
    %c0_i32_0 = arith.constant 0 : i32
    %c0_i32_1 = arith.constant 0 : i32
    return %arg0, %c0_i32, %c0_i32_0 : i32, i32, i32
  }
}

</mosaic_0001>

<llo_original>
// kernel: tpu_custom_call.1
$region0: #{tpu_custom_call.1}
  #allocation0 [shape = 'u32[]', space=smem, size = 0x4, offset = 0x4, fixed_abs, tag = 'smem constant byte address 0x4 - core index']
  #allocation1 [shape = 'u32[144,128]{1,0:T(1,128)}', space=vmem, size = 0x12000, scoped, tag = 'internal scratch']
  %s0 = inlined_call_operand.hbm [shape: f32[1,4,512], index: 0, kind: input, shape index: {}]
  %s1 = inlined_call_operand.hbm [shape: f32[1,4,512], index: 1, kind: input, shape index: {}]
  %s2 = inlined_call_operand.hbm [shape: f32[4,512], index: 2, kind: input, shape index: {}]
  %s3 = inlined_call_operand.hbm [shape: f32[4,512], index: 3, kind: input, shape index: {}]
  %s4 = inlined_call_operand.hbm [shape: f32[9,512], index: 4, kind: input, shape index: {}]
  %s5 = inlined_call_operand.vmem [shape: f32[2,512], index: 5, kind: input, shape index: {}]
  %s6 = inlined_call_operand.vmem [shape: bf16[8,36], index: 6, kind: input, shape index: {}]
  %s7 = inlined_call_operand.vmem [shape: bf16[8,72], index: 7, kind: input, shape index: {}]
  %s8 = inlined_call_operand.vmem [shape: f32[2,8,4], index: 8, kind: output, shape index: {}]
  %s9 = sld [smem:[#allocation0]]
  $region62: #{tpu_custom_call.1} parent=0
    _
  %s11 = ssub.s32 1, %s9
  %s12 = scalar_select 0, %s11, %s9
  $region1: #{tpu_custom_call.1} parent=0
    #allocation2 [shape = 'u8[8192]{0}', space=vmem, size = 0x2000, scoped, tag = 'input window, operand 0, single buffered']
    #allocation3 [shape = 's32[1]{0}', space=sflag, size = 0x4, scoped, tag = 'scoped memory for tpu_custom_call.1']
    #allocation4 [shape = 'u8[8192]{0}', space=vmem, size = 0x2000, scoped, tag = 'input window, operand 1, single buffered']
    #allocation5 [shape = 's32[1]{0}', space=sflag, size = 0x4, scoped, tag = 'scoped memory for tpu_custom_call.1']
    #allocation6 [shape = 'u8[8192]{0}', space=vmem, size = 0x2000, scoped, tag = 'input window, operand 2, single buffered']
    #allocation7 [shape = 'u8[8192]{0}', space=vmem, size = 0x2000, scoped, tag = 'input window, operand 3, single buffered']
    #allocation8 [shape = 's32[1]{0}', space=sflag, size = 0x4, scoped, tag = 'scoped memory for tpu_custom_call.1']
    #allocation9 [shape = 'u8[32768]{0}', space=vmem, size = 0x8000, scoped, tag = 'input window, operand 4, single buffered']
    %13 = vsyncpa [#allocation3], 0
    %14 = vsyncpa [#allocation5], 0
    %15 = vsyncpa [#allocation8], 0
    // Predicated region
    $region2: #{tpu_custom_call.1} parent=1 // pred_check
      _
    $region3: #{tpu_custom_call.1} parent=1 // pred_check_branch
      %17 = sbr.rel (0) target = $region5
    $region4: #{tpu_custom_call.1} parent=1 // pred_region
      %s19 = ssub.s32 256, 256
      %20 = vsyncadd [#allocation3], %s19
      %s22 = sshll.u32 [#allocation2], 4
      %s23 = int_to_ptr.vmem [resolvable:$true] %s22
      %25 = dma.hbm_to_vmem [thread:$0]  %s0, 256, %s23, [#allocation3]
    $region5: #{tpu_custom_call.1} parent=1 // pred_fallthru
      _
    // Predicated region
    $region6: #{tpu_custom_call.1} parent=1 // pred_check
      _
    $region7: #{tpu_custom_call.1} parent=1 // pred_check_branch
      %27 = sbr.rel (0) target = $region9
    $region8: #{tpu_custom_call.1} parent=1 // pred_region
      %s29 = ssub.s32 256, 256
      %30 = vsyncadd [#allocation5], %s29
      %s32 = sshll.u32 [#allocation4], 4
      %s33 = int_to_ptr.vmem [resolvable:$true] %s32
      %35 = dma.hbm_to_vmem [thread:$0]  %s1, 256, %s33, [#allocation5]
    $region9: #{tpu_custom_call.1} parent=1 // pred_fallthru
      _
    // Predicated region
    $region10: #{tpu_custom_call.1} parent=1 // pred_check
      _
    $region11: #{tpu_custom_call.1} parent=1 // pred_check_branch
      %37 = sbr.rel (0) target = $region13
    $region12: #{tpu_custom_call.1} parent=1 // pred_region
      %s39 = ssub.s32 256, 256
      %40 = vsyncadd [#allocation5], %s39
      %s42 = sshll.u32 [#allocation6], 4
      %s43 = int_to_ptr.vmem [resolvable:$true] %s42
      %45 = dma.hbm_to_vmem [thread:$0]  %s2, 256, %s43, [#allocation5]
    $region13: #{tpu_custom_call.1} parent=1 // pred_fallthru
      _
    // Predicated region
    $region14: #{tpu_custom_call.1} parent=1 // pred_check
      _
    $region15: #{tpu_custom_call.1} parent=1 // pred_check_branch
      %47 = sbr.rel (0) target = $region17
    $region16: #{tpu_custom_call.1} parent=1 // pred_region
      %s49 = ssub.s32 256, 256
      %50 = vsyncadd [#allocation8], %s49
      %s52 = sshll.u32 [#allocation7], 4
      %s53 = int_to_ptr.vmem [resolvable:$true] %s52
      %55 = dma.hbm_to_vmem [thread:$0]  %s3, 256, %s53, [#allocation8]
    $region17: #{tpu_custom_call.1} parent=1 // pred_fallthru
      _
    // Predicated region
    $region18: #{tpu_custom_call.1} parent=1 // pred_check
      _
    $region19: #{tpu_custom_call.1} parent=1 // pred_check_branch
      %57 = sbr.rel (0) target = $region21
    $region20: #{tpu_custom_call.1} parent=1 // pred_region
      %s59 = ssub.s32 1024, 1024
      %60 = vsyncadd [#allocation8], %s59
      %s61 = sshll.u32 [#allocation9], 4
      %s62 = int_to_ptr.vmem [resolvable:$true] %s61
      %67 = dma.hbm_to_vmem [thread:$0]  %s4, 1024, %s62, [#allocation8], 512, 512, 32
    $region21: #{tpu_custom_call.1} parent=1 // pred_fallthru
      _
    // Predicated region
    $region22: #{tpu_custom_call.1} parent=1 // pred_check
      _
    $region23: #{tpu_custom_call.1} parent=1 // pred_check_branch
      %69 = sbr.rel (0) target = $region25
    $region24: #{tpu_custom_call.1} parent=1 // pred_region
      _
    $region25: #{tpu_custom_call.1} parent=1 // pred_fallthru
      _
    // Predicated region
    $region26: #{tpu_custom_call.1} parent=1 // pred_check
      _
    $region27: #{tpu_custom_call.1} parent=1 // pred_check_branch
      %71 = sbr.rel (0) target = $region29
    $region28: #{tpu_custom_call.1} parent=1 // pred_region
      _
    $region29: #{tpu_custom_call.1} parent=1 // pred_fallthru
      _
    // Predicated region
    $region30: #{tpu_custom_call.1} parent=1 // pred_check
      _
    $region31: #{tpu_custom_call.1} parent=1 // pred_check_branch
      %73 = sbr.rel (0) target = $region33
    $region32: #{tpu_custom_call.1} parent=1 // pred_region
      _
    $region33: #{tpu_custom_call.1} parent=1 // pred_fallthru
      _
    // Predicated region
    $region34: #{tpu_custom_call.1} parent=1 // pred_check
      _
    $region35: #{tpu_custom_call.1} parent=1 // pred_check_branch
      %75 = sbr.rel (0) target = $region37
    $region36: #{tpu_custom_call.1} parent=1 // pred_region
      %76 = dma.done [#allocation3], 256
    $region37: #{tpu_custom_call.1} parent=1 // pred_fallthru
      _
    // Predicated region
    $region38: #{tpu_custom_call.1} parent=1 // pred_check
      _
    $region39: #{tpu_custom_call.1} parent=1 // pred_check_branch
      %78 = sbr.rel (0) target = $region41
    $region40: #{tpu_custom_call.1} parent=1 // pred_region
      %79 = dma.done [#allocation5], 256
    $region41: #{tpu_custom_call.1} parent=1 // pred_fallthru
      _
    // Predicated region
    $region42: #{tpu_custom_call.1} parent=1 // pred_check
      _
    $region43: #{tpu_custom_call.1} parent=1 // pred_check_branch
      %81 = sbr.rel (0) target = $region45
    $region44: #{tpu_custom_call.1} parent=1 // pred_region
      %82 = dma.done [#allocation5], 256
    $region45: #{tpu_custom_call.1} parent=1 // pred_fallthru
      _
    // Predicated region
    $region46: #{tpu_custom_call.1} parent=1 // pred_check
      _
    $region47: #{tpu_custom_call.1} parent=1 // pred_check_branch
      %84 = sbr.rel (0) target = $region49
    $region48: #{tpu_custom_call.1} parent=1 // pred_region
      %85 = dma.done [#allocation8], 256
    $region49: #{tpu_custom_call.1} parent=1 // pred_fallthru
      _
    // Predicated region
    $region50: #{tpu_custom_call.1} parent=1 // pred_check
      _
    $region51: #{tpu_custom_call.1} parent=1 // pred_check_branch
      %87 = sbr.rel (0) target = $region53
    $region52: #{tpu_custom_call.1} parent=1 // pred_region
      %88 = dma.done [#allocation8], 1024
    $region53: #{tpu_custom_call.1} parent=1 // pred_fallthru
      _
    %v90 = vld [vmem:[#allocation2] sm:$0xff]
    %v91 = vld [vmem:[#allocation2 + $0x8] sm:$0xff]
    %v92 = vld [vmem:[%s5] sm:$0xff]
    %v93 = vld [vmem:[#allocation9] sm:$0xff]
    %v94 = vld [vmem:[#allocation9 + $0x8] sm:$0xff]
    %v95 = vld [vmem:[#allocation9 + $0x10] sm:$0xff]
    %v96 = vld [vmem:[#allocation9 + $0x18] sm:$0xff]
    %v97 = vld [vmem:[#allocation9 + $0x20] sm:$0x1]
    %v98 = vld [vmem:[#allocation9 + $0x28] sm:$0x1]
    %v99 = vld [vmem:[#allocation9 + $0x30] sm:$0x1]
    %v100 = vld [vmem:[#allocation9 + $0x38] sm:$0x1]
    %v103 = vcombine.high %v90, %v90
    %v104 = vcombine.high %v91, %v91
    %vm107 = vcmask 1043456
    %v108 = vsel %vm107, %v90, 0.0
    %v109 = vrot.slane %v108, 4
    %v110 = vadd.f32 %v108, %v109
    %v111 = vrot.slane %v110, 2
    %v112 = vadd.f32 %v110, %v111
    %v113 = vrot.slane %v112, 1
    %v114 = vadd.f32 %v112, %v113
    %v115 = vsel %vm107, %v103, 0.0
    %v116 = vrot.slane %v115, 4
    %v117 = vadd.f32 %v115, %v116
    %v118 = vrot.slane %v117, 2
    %v119 = vadd.f32 %v117, %v118
    %v120 = vrot.slane %v119, 1
    %v121 = vadd.f32 %v119, %v120
    %v122 = vsel %vm107, %v91, 0.0
    %v123 = vrot.slane %v122, 4
    %v124 = vadd.f32 %v122, %v123
    %v125 = vrot.slane %v124, 2
    %v126 = vadd.f32 %v124, %v125
    %v127 = vrot.slane %v126, 1
    %v128 = vadd.f32 %v126, %v127
    %v129 = vsel %vm107, %v104, 0.0
    %v130 = vrot.slane %v129, 4
    %v131 = vadd.f32 %v129, %v130
    %v132 = vrot.slane %v131, 2
    %v133 = vadd.f32 %v131, %v132
    %v134 = vrot.slane %v133, 1
    %v135 = vadd.f32 %v133, %v134
    %v136 = vmul.f32 %v90, %v90
    %v137 = vmul.f32 %v91, %v91
    %v140 = vcombine.high %v136, %v136
    %v141 = vcombine.high %v137, %v137
    %v144 = vsel %vm107, %v136, 0.0
    %v145 = vrot.slane %v144, 4
    %v146 = vadd.f32 %v144, %v145
    %v147 = vrot.slane %v146, 2
    %v148 = vadd.f32 %v146, %v147
    %v149 = vrot.slane %v148, 1
    %v150 = vadd.f32 %v148, %v149
    %v151 = vsel %vm107, %v140, 0.0
    %v152 = vrot.slane %v151, 4
    %v153 = vadd.f32 %v151, %v152
    %v154 = vrot.slane %v153, 2
    %v155 = vadd.f32 %v153, %v154
    %v156 = vrot.slane %v155, 1
    %v157 = vadd.f32 %v155, %v156
    %v158 = vsel %vm107, %v137, 0.0
    %v159 = vrot.slane %v158, 4
    %v160 = vadd.f32 %v158, %v159
    %v161 = vrot.slane %v160, 2
    %v162 = vadd.f32 %v160, %v161
    %v163 = vrot.slane %v162, 1
    %v164 = vadd.f32 %v162, %v163
    %v165 = vsel %vm107, %v141, 0.0
    %v166 = vrot.slane %v165, 4
    %v167 = vadd.f32 %v165, %v166
    %v168 = vrot.slane %v167, 2
    %v169 = vadd.f32 %v167, %v168
    %v170 = vrot.slane %v169, 1
    %v171 = vadd.f32 %v169, %v170
    %vm172 = vcmask 1040384
    %v173 = vsel %vm172, %v114, %v150
    %v174 = vsel %vm172, %v121, %v157
    %v175 = vsel %vm172, %v128, %v164
    %v176 = vsel %vm172, %v135, %v171
    %v178 = vcombine.high %v92, %v92
    %v180 = vunpack.c.l.s4 1983009808
    %v181 = vunpack.c.0.s8 %v180
    %v182 = vlaneseq
    %v183 = vshrl.u32 %v182, 7
    %v184 = vsub.s32 %v181, %v183
    %v185 = vrot.slane %v92, %v184
    %v187 = vunpack.c.l.s4 1983009808
    %v188 = vunpack.c.0.s8 %v187
    %v189 = vlaneseq
    %v190 = vshrl.u32 %v189, 7
    %v191 = vsub.s32 %v188, %v190
    %v192 = vrot.slane %v178, %v191
    %v193 = vcombine.high %v185, %v185
    %v194 = vcombine.high %v192, %v192
    %199 = vmatprep.subr.mxu0 %v193
    %200 = vmatpush1.xpose.msra.mxu0 %v185
    %201 = vmatprep.subr.mxu0 0.0
    %202 = vmatpush1.xpose.msra.mxu0 0.0
    %203 = vmatprep.subr.mxu0 0.0
    %204 = vmatpush1.xpose.msra.mxu0 0.0
    %205 = vmatprep.subr.mxu0 0.0
    %206 = vmatpush1.xpose.msra.mxu0 0.0
    %207 = vmatprep.subr.mxu0 0.0
    %208 = vmatpush1.xpose.msra.mxu0 0.0
    %209 = vmatprep.subr.mxu0 0.0
    %210 = vmatpush1.xpose.msra.mxu0 0.0
    %211 = vmatprep.subr.mxu0 0.0
    %212 = vmatpush1.xpose.msra.mxu0 0.0
    %213 = vmatprep.subr.mxu0 0.0
    %214 = vmatpush1.xpose.msra.mxu0 0.0
    %215 = vmatprep.subr.mxu0 0.0
    %216 = vmatpush1.xpose.msra.mxu0 0.0
    %217 = vmatprep.subr.mxu0 0.0
    %218 = vmatpush1.xpose.msra.mxu0 0.0
    %219 = vmatprep.subr.mxu0 0.0
    %220 = vmatpush1.xpose.msra.mxu0 0.0
    %221 = vmatprep.subr.mxu0 0.0
    %222 = vmatpush1.xpose.msra.mxu0 0.0
    %223 = vmatprep.subr.mxu0 0.0
    %224 = vmatpush1.xpose.msra.mxu0 0.0
    %225 = vmatprep.subr.mxu0 0.0
    %226 = vmatpush1.xpose.msra.mxu0 0.0
    %227 = vmatprep.subr.mxu0 0.0
    %228 = vmatpush1.xpose.msra.mxu0 0.0
    %229 = vmatprep.subr.mxu0 0.0
    %230 = vmatpush1.xpose.msra.mxu0 0.0
    %231 = vmatprep.subr.mxu0 0.0
    %232 = vmatpush1.xpose.msra.mxu0 0.0
    %233 = vmatprep.subr.mxu0 0.0
    %234 = vmatpush1.xpose.msra.mxu0 0.0
    %235 = vmatprep.subr.mxu0 0.0
    %236 = vmatpush1.xpose.msra.mxu0 0.0
    %237 = vmatprep.subr.mxu0 0.0
    %238 = vmatpush1.xpose.msra.mxu0 0.0
    %239 = vmatprep.subr.mxu0 0.0
    %240 = vmatpush1.xpose.msra.mxu0 0.0
    %241 = vmatprep.subr.mxu0 0.0
    %242 = vmatpush1.xpose.msra.mxu0 0.0
    %243 = vmatprep.subr.mxu0 0.0
    %244 = vmatpush1.xpose.msra.mxu0 0.0
    %245 = vmatprep.subr.mxu0 0.0
    %246 = vmatpush1.xpose.msra.mxu0 0.0
    %247 = vmatprep.subr.mxu0 0.0
    %248 = vmatpush1.xpose.msra.mxu0 0.0
    %249 = vmatprep.subr.mxu0 0.0
    %250 = vmatpush1.xpose.msra.mxu0 0.0
    %251 = vmatprep.subr.mxu0 0.0
    %252 = vmatpush1.xpose.msra.mxu0 0.0
    %253 = vmatprep.subr.mxu0 0.0
    %254 = vmatpush1.xpose.msra.mxu0 0.0
    %255 = vmatprep.subr.mxu0 0.0
    %256 = vmatpush1.xpose.msra.mxu0 0.0
    %257 = vmatprep.subr.mxu0 0.0
    %258 = vmatpush1.xpose.msra.mxu0 0.0
    %259 = vmatprep.subr.mxu0 0.0
    %260 = vmatpush1.xpose.msra.mxu0 0.0
    %261 = vmatprep.subr.mxu0 0.0
    %262 = vmatpush1.xpose.msra.mxu0 0.0
    %263 = vmatprep.mubr.f32.mxu0 %v174
    %264 = vmatmul.mubr.f32.gmra.mrb[0].mxu0 %v173
    %v265 = vpop.f32.mrb[0].mxu0
    %v266 = vadd.f32 0.0, %v265
    %v267 = vpop.f32.mrb[0].mxu0
    %268 = vdwg.mxu0
    %269 = vmatprep.subr.mxu0 %v194
    %270 = vmatpush1.xpose.msra.mxu0 %v192
    %271 = vmatprep.subr.mxu0 0.0
    %272 = vmatpush1.xpose.msra.mxu0 0.0
    %273 = vmatprep.subr.mxu0 0.0
    %274 = vmatpush1.xpose.msra.mxu0 0.0
    %275 = vmatprep.subr.mxu0 0.0
    %276 = vmatpush1.xpose.msra.mxu0 0.0
    %277 = vmatprep.subr.mxu0 0.0
    %278 = vmatpush1.xpose.msra.mxu0 0.0
    %279 = vmatprep.subr.mxu0 0.0
    %280 = vmatpush1.xpose.msra.mxu0 0.0
    %281 = vmatprep.subr.mxu0 0.0
    %282 = vmatpush1.xpose.msra.mxu0 0.0
    %283 = vmatprep.subr.mxu0 0.0
    %284 = vmatpush1.xpose.msra.mxu0 0.0
    %285 = vmatprep.subr.mxu0 0.0
    %286 = vmatpush1.xpose.msra.mxu0 0.0
    %287 = vmatprep.subr.mxu0 0.0
    %288 = vmatpush1.xpose.msra.mxu0 0.0
    %289 = vmatprep.subr.mxu0 0.0
    %290 = vmatpush1.xpose.msra.mxu0 0.0
    %291 = vmatprep.subr.mxu0 0.0
    %292 = vmatpush1.xpose.msra.mxu0 0.0
    %293 = vmatprep.subr.mxu0 0.0
    %294 = vmatpush1.xpose.msra.mxu0 0.0
    %295 = vmatprep.subr.mxu0 0.0
    %296 = vmatpush1.xpose.msra.mxu0 0.0
    %297 = vmatprep.subr.mxu0 0.0
    %298 = vmatpush1.xpose.msra.mxu0 0.0
    %299 = vmatprep.subr.mxu0 0.0
    %300 = vmatpush1.xpose.msra.mxu0 0.0
    %301 = vmatprep.subr.mxu0 0.0
    %302 = vmatpush1.xpose.msra.mxu0 0.0
    %303 = vmatprep.subr.mxu0 0.0
    %304 = vmatpush1.xpose.msra.mxu0 0.0
    %305 = vmatprep.subr.mxu0 0.0
    %306 = vmatpush1.xpose.msra.mxu0 0.0
    %307 = vmatprep.subr.mxu0 0.0
    %308 = vmatpush1.xpose.msra.mxu0 0.0
    %309 = vmatprep.subr.mxu0 0.0
    %310 = vmatpush1.xpose.msra.mxu0 0.0
    %311 = vmatprep.subr.mxu0 0.0
    %312 = vmatpush1.xpose.msra.mxu0 0.0
    %313 = vmatprep.subr.mxu0 0.0
    %314 = vmatpush1.xpose.msra.mxu0 0.0
    %315 = vmatprep.subr.mxu0 0.0
    %316 = vmatpush1.xpose.msra.mxu0 0.0
    %317 = vmatprep.subr.mxu0 0.0
    %318 = vmatpush1.xpose.msra.mxu0 0.0
    %319 = vmatprep.subr.mxu0 0.0
    %320 = vmatpush1.xpose.msra.mxu0 0.0
    %321 = vmatprep.subr.mxu0 0.0
    %322 = vmatpush1.xpose.msra.mxu0 0.0
    %323 = vmatprep.subr.mxu0 0.0
    %324 = vmatpush1.xpose.msra.mxu0 0.0
    %325 = vmatprep.subr.mxu0 0.0
    %326 = vmatpush1.xpose.msra.mxu0 0.0
    %327 = vmatprep.subr.mxu0 0.0
    %328 = vmatpush1.xpose.msra.mxu0 0.0
    %329 = vmatprep.subr.mxu0 0.0
    %330 = vmatpush1.xpose.msra.mxu0 0.0
    %331 = vmatprep.subr.mxu0 0.0
    %332 = vmatpush1.xpose.msra.mxu0 0.0
    %333 = vmatprep.mubr.f32.mxu0 %v176
    %334 = vmatmul.mubr.f32.gmra.mrb[0].mxu0 %v175
    %v335 = vpop.f32.mrb[0].mxu0
    %v336 = vadd.f32 %v266, %v335
    %v337 = vpop.f32.mrb[0].mxu0
    %338 = vdwg.mxu0
    %v339 = vmul.f32 %v336, 0.0009765625
    %v340 = vmul.f32 %v339, %v339
    %v342 = vrot.slane %v340, 7
    %v344 = vsub.f32 %v339, %v342
    %v345 = vadd.f32 %v344, 1e-05
    %v346 = vrsqrt.pop %v345
    %v347 = vsel %vm172, %v339, %v346
    %vm348 = vcmask 15360
    %v350 = vsel %vm348, %v347, 0
    %vm352 = vcmask 1041408
    %v353 = vsel %vm352, %v185, 0
    %v355 = vsel %vm352, %v193, 0
    %v357 = vsel %vm352, %v192, 0
    %v359 = vsel %vm352, %v194, 0
    %361 = vmatprep.subr.mxu0 %v355
    %362 = vmatpush1.msra.mxu0 %v353
    %363 = vmatprep.subr.mxu0 0.0
    %364 = vmatpush1.msra.mxu0 0.0
    %365 = vmatprep.subr.mxu0 0.0
    %366 = vmatpush1.msra.mxu0 0.0
    %367 = vmatprep.subr.mxu0 0.0
    %368 = vmatpush1.msra.mxu0 0.0
    %369 = vmatprep.subr.mxu0 0.0
    %370 = vmatpush1.msra.mxu0 0.0
    %371 = vmatprep.subr.mxu0 0.0
    %372 = vmatpush1.msra.mxu0 0.0
    %373 = vmatprep.subr.mxu0 0.0
    %374 = vmatpush1.msra.mxu0 0.0
    %375 = vmatprep.subr.mxu0 0.0
    %376 = vmatpush1.msra.mxu0 0.0
    %377 = vmatprep.subr.mxu0 0.0
    %378 = vmatpush1.msra.mxu0 0.0
    %379 = vmatprep.subr.mxu0 0.0
    %380 = vmatpush1.msra.mxu0 0.0
    %381 = vmatprep.subr.mxu0 0.0
    %382 = vmatpush1.msra.mxu0 0.0
    %383 = vmatprep.subr.mxu0 0.0
    %384 = vmatpush1.msra.mxu0 0.0
    %385 = vmatprep.subr.mxu0 0.0
    %386 = vmatpush1.msra.mxu0 0.0
    %387 = vmatprep.subr.mxu0 0.0
    %388 = vmatpush1.msra.mxu0 0.0
    %389 = vmatprep.subr.mxu0 0.0
    %390 = vmatpush1.msra.mxu0 0.0
    %391 = vmatprep.subr.mxu0 0.0
    %392 = vmatpush1.msra.mxu0 0.0
    %393 = vmatprep.subr.mxu0 0.0
    %394 = vmatpush1.msra.mxu0 0.0
    %395 = vmatprep.subr.mxu0 0.0
    %396 = vmatpush1.msra.mxu0 0.0
    %397 = vmatprep.subr.mxu0 0.0
    %398 = vmatpush1.msra.mxu0 0.0
    %399 = vmatprep.subr.mxu0 0.0
    %400 = vmatpush1.msra.mxu0 0.0
    %401 = vmatprep.subr.mxu0 0.0
    %402 = vmatpush1.msra.mxu0 0.0
    %403 = vmatprep.subr.mxu0 0.0
    %404 = vmatpush1.msra.mxu0 0.0
    %405 = vmatprep.subr.mxu0 0.0
    %406 = vmatpush1.msra.mxu0 0.0
    %407 = vmatprep.subr.mxu0 0.0
    %408 = vmatpush1.msra.mxu0 0.0
    %409 = vmatprep.subr.mxu0 0.0
    %410 = vmatpush1.msra.mxu0 0.0
    %411 = vmatprep.subr.mxu0 0.0
    %412 = vmatpush1.msra.mxu0 0.0
    %413 = vmatprep.subr.mxu0 0.0
    %414 = vmatpush1.msra.mxu0 0.0
    %415 = vmatprep.subr.mxu0 0.0
    %416 = vmatpush1.msra.mxu0 0.0
    %417 = vmatprep.subr.mxu0 0.0
    %418 = vmatpush1.msra.mxu0 0.0
    %419 = vmatprep.subr.mxu0 0.0
    %420 = vmatpush1.msra.mxu0 0.0
    %421 = vmatprep.subr.mxu0 0.0
    %422 = vmatpush1.msra.mxu0 0.0
    %423 = vmatprep.subr.mxu0 0.0
    %424 = vmatpush1.msra.mxu0 0.0
    %425 = vmatprep.mubr.f32.mxu0 0.0
    %426 = vmatmul.mubr.f32.gmra.mrb[0].mxu0 %v350
    %v427 = vpop.f32.mrb[0].mxu0
    %v428 = vadd.f32 0.0, %v427
    %v429 = vpop.f32.mrb[0].mxu0
    %v430 = vadd.f32 0.0, %v429
    %431 = vdwg.mxu0
    %432 = vmatprep.subr.mxu0 %v359
    %433 = vmatpush1.msra.mxu0 %v357
    %434 = vmatprep.subr.mxu0 0.0
    %435 = vmatpush1.msra.mxu0 0.0
    %436 = vmatprep.subr.mxu0 0.0
    %437 = vmatpush1.msra.mxu0 0.0
    %438 = vmatprep.subr.mxu0 0.0
    %439 = vmatpush1.msra.mxu0 0.0
    %440 = vmatprep.subr.mxu0 0.0
    %441 = vmatpush1.msra.mxu0 0.0
    %442 = vmatprep.subr.mxu0 0.0
    %443 = vmatpush1.msra.mxu0 0.0
    %444 = vmatprep.subr.mxu0 0.0
    %445 = vmatpush1.msra.mxu0 0.0
    %446 = vmatprep.subr.mxu0 0.0
    %447 = vmatpush1.msra.mxu0 0.0
    %448 = vmatprep.subr.mxu0 0.0
    %449 = vmatpush1.msra.mxu0 0.0
    %450 = vmatprep.subr.mxu0 0.0
    %451 = vmatpush1.msra.mxu0 0.0
    %452 = vmatprep.subr.mxu0 0.0
    %453 = vmatpush1.msra.mxu0 0.0
    %454 = vmatprep.subr.mxu0 0.0
    %455 = vmatpush1.msra.mxu0 0.0
    %456 = vmatprep.subr.mxu0 0.0
    %457 = vmatpush1.msra.mxu0 0.0
    %458 = vmatprep.subr.mxu0 0.0
    %459 = vmatpush1.msra.mxu0 0.0
    %460 = vmatprep.subr.mxu0 0.0
    %461 = vmatpush1.msra.mxu0 0.0
    %462 = vmatprep.subr.mxu0 0.0
    %463 = vmatpush1.msra.mxu0 0.0
    %464 = vmatprep.subr.mxu0 0.0
    %465 = vmatpush1.msra.mxu0 0.0
    %466 = vmatprep.subr.mxu0 0.0
    %467 = vmatpush1.msra.mxu0 0.0
    %468 = vmatprep.subr.mxu0 0.0
    %469 = vmatpush1.msra.mxu0 0.0
    %470 = vmatprep.subr.mxu0 0.0
    %471 = vmatpush1.msra.mxu0 0.0
    %472 = vmatprep.subr.mxu0 0.0
    %473 = vmatpush1.msra.mxu0 0.0
    %474 = vmatprep.subr.mxu0 0.0
    %475 = vmatpush1.msra.mxu0 0.0
    %476 = vmatprep.subr.mxu0 0.0
    %477 = vmatpush1.msra.mxu0 0.0
    %478 = vmatprep.subr.mxu0 0.0
    %479 = vmatpush1.msra.mxu0 0.0
    %480 = vmatprep.subr.mxu0 0.0
    %481 = vmatpush1.msra.mxu0 0.0
    %482 = vmatprep.subr.mxu0 0.0
    %483 = vmatpush1.msra.mxu0 0.0
    %484 = vmatprep.subr.mxu0 0.0
    %485 = vmatpush1.msra.mxu0 0.0
    %486 = vmatprep.subr.mxu0 0.0
    %487 = vmatpush1.msra.mxu0 0.0
    %488 = vmatprep.subr.mxu0 0.0
    %489 = vmatpush1.msra.mxu0 0.0
    %490 = vmatprep.subr.mxu0 0.0
    %491 = vmatpush1.msra.mxu0 0.0
    %492 = vmatprep.subr.mxu0 0.0
    %493 = vmatpush1.msra.mxu0 0.0
    %494 = vmatprep.subr.mxu0 0.0
    %495 = vmatpush1.msra.mxu0 0.0
    %496 = vmatprep.mubr.f32.mxu0 0.0
    %497 = vmatmul.mubr.f32.gmra.mrb[0].mxu0 %v350
    %v498 = vpop.f32.mrb[0].mxu0
    %v499 = vadd.f32 0.0, %v498
    %v500 = vpop.f32.mrb[0].mxu0
    %v501 = vadd.f32 0.0, %v500
    %502 = vdwg.mxu0
    %v503 = vlaneseq
    %v504 = vshrl.u32 %v503, 7
    %v505 = vsub.s32 0, %v504
    %v506 = vrot.slane %v428, %v505
    %v507 = vlaneseq
    %v508 = vshrl.u32 %v507, 7
    %v509 = vsub.s32 0, %v508
    %v510 = vrot.slane %v430, %v509
    %v511 = vlaneseq
    %v512 = vshrl.u32 %v511, 7
    %v513 = vsub.s32 0, %v512
    %v514 = vrot.slane %v499, %v513
    %v515 = vlaneseq
    %v516 = vshrl.u32 %v515, 7
    %v517 = vsub.s32 0, %v516
    %v518 = vrot.slane %v501, %v517
    %v523 = vcombine.low %v506, %v510
    %v524 = vcombine.low %v514, %v518
    %v527 = vsub.f32 %v90, %v523
    %v528 = vsub.f32 %v91, %v524
    %v529 = vlaneseq
    %v530 = vshrl.u32 %v529, 7
    %v531 = vsub.s32 1, %v530
    %v532 = vrot.slane %v428, %v531
    %v533 = vlaneseq
    %v534 = vshrl.u32 %v533, 7
    %v535 = vsub.s32 1, %v534
    %v536 = vrot.slane %v430, %v535
    %v537 = vlaneseq
    %v538 = vshrl.u32 %v537, 7
    %v539 = vsub.s32 1, %v538
    %v540 = vrot.slane %v499, %v539
    %v541 = vlaneseq
    %v542 = vshrl.u32 %v541, 7
    %v543 = vsub.s32 1, %v542
    %v544 = vrot.slane %v501, %v543
    %v549 = vcombine.low %v532, %v536
    %v550 = vcombine.low %v540, %v544
    %v553 = vmul.f32 %v527, %v549
    %v554 = vmul.f32 %v528, %v550
    %v555 = vld [vmem:[#allocation6] sm:$0xff]
    %v556 = vld [vmem:[#allocation6 + $0x8] sm:$0xff]
    %v557 = vmul.f32 %v553, %v555
    %v558 = vmul.f32 %v554, %v556
    %v559 = vld [vmem:[#allocation7] sm:$0xff]
    %v560 = vld [vmem:[#allocation7 + $0x8] sm:$0xff]
    %v561 = vadd.f32 %v557, %v559
    %v562 = vadd.f32 %v558, %v560
    %v565 = vcombine.high %v561, %v561
    %v566 = vcombine.high %v562, %v562
    %569 = vrot.lane.b32.xlu0 %v561, 17
    %v570 = vpop.permute.xlu0 %569
    %571 = vrot.lane.b32.xlu0 %v565, 17
    %v572 = vpop.permute.xlu0 %571
    %573 = vrot.lane.b32.xlu0 %v562, 17
    %v574 = vpop.permute.xlu0 %573
    %575 = vrot.lane.b32.xlu0 %v566, 17
    %v576 = vpop.permute.xlu0 %575
    %v577 = vlaneseq
    %v578 = vand.u32 %v577, 127
    %vm579 = vcmp.lt.s32.totalorder %v578, 17
    %v580 = vsel %vm579, %v574, %v576
    %v581 = vsel %vm579, %v572, %v574
    %v582 = vsel %vm579, %v570, %v572
    %v583 = vsel %vm579, %v576, %v570
    %v584 = vlaneseq
    %v585 = vshrl.u32 %v584, 7
    %v586 = vsub.s32 0, %v585
    %v587 = vrot.slane %v93, %v586
    %v588 = vlaneseq
    %v589 = vshrl.u32 %v588, 7
    %v590 = vsub.s32 0, %v589
    %v591 = vrot.slane %v94, %v590
    %v592 = vlaneseq
    %v593 = vshrl.u32 %v592, 7
    %v594 = vsub.s32 0, %v593
    %v595 = vrot.slane %v95, %v594
    %v596 = vlaneseq
    %v597 = vshrl.u32 %v596, 7
    %v598 = vsub.s32 0, %v597
    %v599 = vrot.slane %v96, %v598
    %v600 = vmul.f32 %v583, %v587
    %v601 = vmul.f32 %v582, %v591
    %v602 = vmul.f32 %v581, %v595
    %v603 = vmul.f32 %v580, %v599
    %604 = vrot.lane.b32.xlu0 %v561, 16
    %v605 = vpop.permute.xlu0 %604
    %606 = vrot.lane.b32.xlu0 %v565, 16
    %v607 = vpop.permute.xlu0 %606
    %608 = vrot.lane.b32.xlu0 %v562, 16
    %v609 = vpop.permute.xlu0 %608
    %610 = vrot.lane.b32.xlu0 %v566, 16
    %v611 = vpop.permute.xlu0 %610
    %vm612 = vcmp.lt.s32.totalorder %v578, 16
    %v613 = vsel %vm612, %v609, %v611
    %v614 = vsel %vm612, %v607, %v609
    %v615 = vsel %vm612, %v605, %v607
    %v616 = vsel %vm612, %v611, %v605
    %v617 = vlaneseq
    %v618 = vshrl.u32 %v617, 7
    %v619 = vsub.s32 1, %v618
    %v620 = vrot.slane %v93, %v619
    %v621 = vlaneseq
    %v622 = vshrl.u32 %v621, 7
    %v623 = vsub.s32 1, %v622
    %v624 = vrot.slane %v94, %v623
    %v625 = vlaneseq
    %v626 = vshrl.u32 %v625, 7
    %v627 = vsub.s32 1, %v626
    %v628 = vrot.slane %v95, %v627
    %v629 = vlaneseq
    %v630 = vshrl.u32 %v629, 7
    %v631 = vsub.s32 1, %v630
    %v632 = vrot.slane %v96, %v631
    %v633 = vmul.f32 %v616, %v620
    %v634 = vmul.f32 %v615, %v624
    %v635 = vmul.f32 %v614, %v628
    %v636 = vmul.f32 %v613, %v632
    %637 = vrot.lane.b32.xlu0 %v561, 15
    %v638 = vpop.permute.xlu0 %637
    %639 = vrot.lane.b32.xlu0 %v565, 15
    %v640 = vpop.permute.xlu0 %639
    %641 = vrot.lane.b32.xlu0 %v562, 15
    %v642 = vpop.permute.xlu0 %641
    %643 = vrot.lane.b32.xlu0 %v566, 15
    %v644 = vpop.permute.xlu0 %643
    %vm645 = vcmp.lt.s32.totalorder %v578, 15
    %v646 = vsel %vm645, %v642, %v644
    %v647 = vsel %vm645, %v640, %v642
    %v648 = vsel %vm645, %v638, %v640
    %v649 = vsel %vm645, %v644, %v638
    %v650 = vlaneseq
    %v651 = vshrl.u32 %v650, 7
    %v652 = vsub.s32 2, %v651
    %v653 = vrot.slane %v93, %v652
    %v654 = vlaneseq
    %v655 = vshrl.u32 %v654, 7
    %v656 = vsub.s32 2, %v655
    %v657 = vrot.slane %v94, %v656
    %v658 = vlaneseq
    %v659 = vshrl.u32 %v658, 7
    %v660 = vsub.s32 2, %v659
    %v661 = vrot.slane %v95, %v660
    %v662 = vlaneseq
    %v663 = vshrl.u32 %v662, 7
    %v664 = vsub.s32 2, %v663
    %v665 = vrot.slane %v96, %v664
    %v666 = vmul.f32 %v649, %v653
    %v667 = vmul.f32 %v648, %v657
    %v668 = vmul.f32 %v647, %v661
    %v669 = vmul.f32 %v646, %v665
    %670 = vrot.lane.b32.xlu0 %v561, 1
    %v671 = vpop.permute.xlu0 %670
    %672 = vrot.lane.b32.xlu0 %v565, 1
    %v673 = vpop.permute.xlu0 %672
    %674 = vrot.lane.b32.xlu0 %v562, 1
    %v675 = vpop.permute.xlu0 %674
    %676 = vrot.lane.b32.xlu0 %v566, 1
    %v677 = vpop.permute.xlu0 %676
    %vm678 = vcmp.lt.s32.totalorder %v578, 1
    %v679 = vsel %vm678, %v675, %v677
    %v680 = vsel %vm678, %v673, %v675
    %v681 = vsel %vm678, %v671, %v673
    %v682 = vsel %vm678, %v677, %v671
    %v683 = vlaneseq
    %v684 = vshrl.u32 %v683, 7
    %v685 = vsub.s32 3, %v684
    %v686 = vrot.slane %v93, %v685
    %v687 = vlaneseq
    %v688 = vshrl.u32 %v687, 7
    %v689 = vsub.s32 3, %v688
    %v690 = vrot.slane %v94, %v689
    %v691 = vlaneseq
    %v692 = vshrl.u32 %v691, 7
    %v693 = vsub.s32 3, %v692
    %v694 = vrot.slane %v95, %v693
    %v695 = vlaneseq
    %v696 = vshrl.u32 %v695, 7
    %v697 = vsub.s32 3, %v696
    %v698 = vrot.slane %v96, %v697
    %v699 = vmul.f32 %v682, %v686
    %v700 = vmul.f32 %v681, %v690
    %v701 = vmul.f32 %v680, %v694
    %v702 = vmul.f32 %v679, %v698
    %v703 = vlaneseq
    %v704 = vshrl.u32 %v703, 7
    %v705 = vsub.s32 4, %v704
    %v706 = vrot.slane %v93, %v705
    %v707 = vlaneseq
    %v708 = vshrl.u32 %v707, 7
    %v709 = vsub.s32 4, %v708
    %v710 = vrot.slane %v94, %v709
    %v711 = vlaneseq
    %v712 = vshrl.u32 %v711, 7
    %v713 = vsub.s32 4, %v712
    %v714 = vrot.slane %v95, %v713
    %v715 = vlaneseq
    %v716 = vshrl.u32 %v715, 7
    %v717 = vsub.s32 4, %v716
    %v718 = vrot.slane %v96, %v717
    %v723 = vcombine.low %v706, %v710
    %v724 = vcombine.low %v714, %v718
    %v727 = vmul.f32 %v561, %v723
    %v728 = vmul.f32 %v562, %v724
    %729 = vrot.lane.b32.xlu0 %v561, 127
    %v730 = vpop.permute.xlu0 %729
    %731 = vrot.lane.b32.xlu0 %v565, 127
    %v732 = vpop.permute.xlu0 %731
    %733 = vrot.lane.b32.xlu0 %v562, 127
    %v734 = vpop.permute.xlu0 %733
    %735 = vrot.lane.b32.xlu0 %v566, 127
    %v736 = vpop.permute.xlu0 %735
    %vm737 = vcmp.lt.s32.totalorder %v578, 127
    %v738 = vsel %vm737, %v734, %v736
    %v739 = vsel %vm737, %v732, %v734
    %v740 = vsel %vm737, %v730, %v732
    %v741 = vsel %vm737, %v736, %v730
    %v742 = vlaneseq
    %v743 = vshrl.u32 %v742, 7
    %v744 = vsub.s32 5, %v743
    %v745 = vrot.slane %v93, %v744
    %v746 = vlaneseq
    %v747 = vshrl.u32 %v746, 7
    %v748 = vsub.s32 5, %v747
    %v749 = vrot.slane %v94, %v748
    %v750 = vlaneseq
    %v751 = vshrl.u32 %v750, 7
    %v752 = vsub.s32 5, %v751
    %v753 = vrot.slane %v95, %v752
    %v754 = vlaneseq
    %v755 = vshrl.u32 %v754, 7
    %v756 = vsub.s32 5, %v755
    %v757 = vrot.slane %v96, %v756
    %v758 = vmul.f32 %v740, %v745
    %v759 = vmul.f32 %v739, %v749
    %v760 = vmul.f32 %v738, %v753
    %v761 = vmul.f32 %v741, %v757
    %762 = vrot.lane.b32.xlu0 %v561, 113
    %v763 = vpop.permute.xlu0 %762
    %764 = vrot.lane.b32.xlu0 %v565, 113
    %v765 = vpop.permute.xlu0 %764
    %766 = vrot.lane.b32.xlu0 %v562, 113
    %v767 = vpop.permute.xlu0 %766
    %768 = vrot.lane.b32.xlu0 %v566, 113
    %v769 = vpop.permute.xlu0 %768
    %vm770 = vcmp.lt.s32.totalorder %v578, 113
    %v771 = vsel %vm770, %v767, %v769
    %v772 = vsel %vm770, %v765, %v767
    %v773 = vsel %vm770, %v763, %v765
    %v774 = vsel %vm770, %v769, %v763
    %v775 = vlaneseq
    %v776 = vshrl.u32 %v775, 7
    %v777 = vsub.s32 6, %v776
    %v778 = vrot.slane %v93, %v777
    %v779 = vlaneseq
    %v780 = vshrl.u32 %v779, 7
    %v781 = vsub.s32 6, %v780
    %v782 = vrot.slane %v94, %v781
    %v783 = vlaneseq
    %v784 = vshrl.u32 %v783, 7
    %v785 = vsub.s32 6, %v784
    %v786 = vrot.slane %v95, %v785
    %v787 = vlaneseq
    %v788 = vshrl.u32 %v787, 7
    %v789 = vsub.s32 6, %v788
    %v790 = vrot.slane %v96, %v789
    %v791 = vmul.f32 %v773, %v778
    %v792 = vmul.f32 %v772, %v782
    %v793 = vmul.f32 %v771, %v786
    %v794 = vmul.f32 %v774, %v790
    %795 = vrot.lane.b32.xlu0 %v561, 112
    %v796 = vpop.permute.xlu0 %795
    %797 = vrot.lane.b32.xlu0 %v565, 112
    %v798 = vpop.permute.xlu0 %797
    %799 = vrot.lane.b32.xlu0 %v562, 112
    %v800 = vpop.permute.xlu0 %799
    %801 = vrot.lane.b32.xlu0 %v566, 112
    %v802 = vpop.permute.xlu0 %801
    %vm803 = vcmp.lt.s32.totalorder %v578, 112
    %v804 = vsel %vm803, %v800, %v802
    %v805 = vsel %vm803, %v798, %v800
    %v806 = vsel %vm803, %v796, %v798
    %v807 = vsel %vm803, %v802, %v796
    %v808 = vlaneseq
    %v809 = vshrl.u32 %v808, 7
    %v810 = vsub.s32 7, %v809
    %v811 = vrot.slane %v93, %v810
    %v812 = vlaneseq
    %v813 = vshrl.u32 %v812, 7
    %v814 = vsub.s32 7, %v813
    %v815 = vrot.slane %v94, %v814
    %v816 = vlaneseq
    %v817 = vshrl.u32 %v816, 7
    %v818 = vsub.s32 7, %v817
    %v819 = vrot.slane %v95, %v818
    %v820 = vlaneseq
    %v821 = vshrl.u32 %v820, 7
    %v822 = vsub.s32 7, %v821
    %v823 = vrot.slane %v96, %v822
    %v824 = vmul.f32 %v806, %v811
    %v825 = vmul.f32 %v805, %v815
    %v826 = vmul.f32 %v804, %v819
    %v827 = vmul.f32 %v807, %v823
    %828 = vrot.lane.b32.xlu0 %v561, 111
    %v829 = vpop.permute.xlu0 %828
    %830 = vrot.lane.b32.xlu0 %v565, 111
    %v831 = vpop.permute.xlu0 %830
    %832 = vrot.lane.b32.xlu0 %v562, 111
    %v833 = vpop.permute.xlu0 %832
    %834 = vrot.lane.b32.xlu0 %v566, 111
    %v835 = vpop.permute.xlu0 %834
    %vm836 = vcmp.lt.s32.totalorder %v578, 111
    %v837 = vsel %vm836, %v833, %v835
    %v838 = vsel %vm836, %v831, %v833
    %v839 = vsel %vm836, %v829, %v831
    %v840 = vsel %vm836, %v835, %v829
    %v841 = vlaneseq
    %v842 = vshrl.u32 %v841, 7
    %v843 = vsub.s32 0, %v842
    %v844 = vrot.slane %v97, %v843
    %v845 = vlaneseq
    %v846 = vshrl.u32 %v845, 7
    %v847 = vsub.s32 0, %v846
    %v848 = vrot.slane %v98, %v847
    %v849 = vlaneseq
    %v850 = vshrl.u32 %v849, 7
    %v851 = vsub.s32 0, %v850
    %v852 = vrot.slane %v99, %v851
    %v853 = vlaneseq
    %v854 = vshrl.u32 %v853, 7
    %v855 = vsub.s32 0, %v854
    %v856 = vrot.slane %v100, %v855
    %v857 = vmul.f32 %v839, %v844
    %v858 = vmul.f32 %v838, %v848
    %v859 = vmul.f32 %v837, %v852
    %v860 = vmul.f32 %v840, %v856
    %v865 = vrot.slane %v633, 4
    %v866 = vrot.slane %v634, 4
    %v867 = vrot.slane %v635, 4
    %v868 = vrot.slane %v636, 4
    %v877 = vrot.slane %v699, 4
    %v878 = vrot.slane %v700, 4
    %v879 = vrot.slane %v701, 4
    %v880 = vrot.slane %v702, 4
    %v887 = vcombine.high %v727, %v727
    %v888 = vcombine.high %v728, %v728
    %v895 = vrot.slane %v758, 4
    %v896 = vrot.slane %v759, 4
    %v897 = vrot.slane %v760, 4
    %v898 = vrot.slane %v761, 4
    %v907 = vrot.slane %v824, 4
    %v908 = vrot.slane %v825, 4
    %v909 = vrot.slane %v826, 4
    %v910 = vrot.slane %v827, 4
    %v915 = vsel %vm107, %v600, %v865
    %v916 = vsel %vm107, %v601, %v866
    %v917 = vsel %vm107, %v602, %v867
    %v918 = vsel %vm107, %v603, %v868
    %v919 = vsel %vm107, %v666, %v877
    %v920 = vsel %vm107, %v667, %v878
    %v921 = vsel %vm107, %v668, %v879
    %v922 = vsel %vm107, %v669, %v880
    %v923 = vsel %vm107, %v727, %v895
    %v924 = vsel %vm107, %v887, %v896
    %v925 = vsel %vm107, %v728, %v897
    %v926 = vsel %vm107, %v888, %v898
    %v927 = vsel %vm107, %v791, %v907
    %v928 = vsel %vm107, %v792, %v908
    %v929 = vsel %vm107, %v793, %v909
    %v930 = vsel %vm107, %v794, %v910
    %v931 = vld [vmem:[%s6] sm:$0xf]
    %v932 = vpack.c.bf16 %v919, %v915
    %v933 = vpack.c.bf16 %v920, %v916
    %v934 = vpack.c.bf16 %v921, %v917
    %v935 = vpack.c.bf16 %v922, %v918
    %v936 = vpack.c.bf16 %v927, %v923
    %v937 = vpack.c.bf16 %v928, %v924
    %v938 = vpack.c.bf16 %v929, %v925
    %v939 = vpack.c.bf16 %v930, %v926
    %v940 = vpack.c.bf16 %v857, %v857
    %v941 = vpack.c.bf16 %v858, %v858
    %v942 = vpack.c.bf16 %v859, %v859
    %v943 = vpack.c.bf16 %v860, %v860
    %vm944 = vcmask 293888
    %v946 = vsel %vm944, %v931, 0
    %v949 = vsel %vm352, %v940, 0
    %v952 = vsel %vm352, %v941, 0
    %v955 = vsel %vm352, %v942, 0
    %v958 = vsel %vm352, %v943, 0
    %960 = vmatprep.subr.bf16.mxu0 %v933
    %961 = vmatpush1.bf16.msra.mxu0 %v932
    %962 = vmatprep.subr.bf16.mxu0 %v937
    %963 = vmatpush1.bf16.msra.mxu0 %v936
    %964 = vmatprep.subr.bf16.mxu0 %v952
    %965 = vmatpush1.bf16.msra.mxu0 %v949
    %966 = vmatprep.subr.bf16.mxu0 0
    %967 = vmatpush1.bf16.msra.mxu0 0
    %968 = vmatprep.subr.bf16.mxu0 0
    %969 = vmatpush1.bf16.msra.mxu0 0
    %970 = vmatprep.subr.bf16.mxu0 0
    %971 = vmatpush1.bf16.msra.mxu0 0
    %972 = vmatprep.subr.bf16.mxu0 0
    %973 = vmatpush1.bf16.msra.mxu0 0
    %974 = vmatprep.subr.bf16.mxu0 0
    %975 = vmatpush1.bf16.msra.mxu0 0
    %976 = vmatprep.subr.bf16.mxu0 0
    %977 = vmatpush1.bf16.msra.mxu0 0
    %978 = vmatprep.subr.bf16.mxu0 0
    %979 = vmatpush1.bf16.msra.mxu0 0
    %980 = vmatprep.subr.bf16.mxu0 0
    %981 = vmatpush1.bf16.msra.mxu0 0
    %982 = vmatprep.subr.bf16.mxu0 0
    %983 = vmatpush1.bf16.msra.mxu0 0
    %984 = vmatprep.subr.bf16.mxu0 0
    %985 = vmatpush1.bf16.msra.mxu0 0
    %986 = vmatprep.subr.bf16.mxu0 0
    %987 = vmatpush1.bf16.msra.mxu0 0
    %988 = vmatprep.subr.bf16.mxu0 0
    %989 = vmatpush1.bf16.msra.mxu0 0
    %990 = vmatprep.subr.bf16.mxu0 0
    %991 = vmatpush1.bf16.msra.mxu0 0
    %992 = vmatprep.mubr.bf16.mxu0 0
    %993 = vmatmul.mubr.bf16.gmra.mrb[0].mxu0 %v946
    %v994 = vpop.f32.mrb[0].mxu0
    %v995 = vadd.f32 0.0, %v994
    %v996 = vpop.f32.mrb[0].mxu0
    %v997 = vadd.f32 0.0, %v996
    %v998 = vpop.f32.mrb[0].mxu0
    %v999 = vpop.f32.mrb[0].mxu0
    %1000 = vdwg.mxu0
    %1001 = vmatprep.subr.bf16.mxu0 %v935
    %1002 = vmatpush1.bf16.msra.mxu0 %v934
    %1003 = vmatprep.subr.bf16.mxu0 %v939
    %1004 = vmatpush1.bf16.msra.mxu0 %v938
    %1005 = vmatprep.subr.bf16.mxu0 %v958
    %1006 = vmatpush1.bf16.msra.mxu0 %v955
    %1007 = vmatprep.subr.bf16.mxu0 0
    %1008 = vmatpush1.bf16.msra.mxu0 0
    %1009 = vmatprep.subr.bf16.mxu0 0
    %1010 = vmatpush1.bf16.msra.mxu0 0
    %1011 = vmatprep.subr.bf16.mxu0 0
    %1012 = vmatpush1.bf16.msra.mxu0 0
    %1013 = vmatprep.subr.bf16.mxu0 0
    %1014 = vmatpush1.bf16.msra.mxu0 0
    %1015 = vmatprep.subr.bf16.mxu0 0
    %1016 = vmatpush1.bf16.msra.mxu0 0
    %1017 = vmatprep.subr.bf16.mxu0 0
    %1018 = vmatpush1.bf16.msra.mxu0 0
    %1019 = vmatprep.subr.bf16.mxu0 0
    %1020 = vmatpush1.bf16.msra.mxu0 0
    %1021 = vmatprep.subr.bf16.mxu0 0
    %1022 = vmatpush1.bf16.msra.mxu0 0
    %1023 = vmatprep.subr.bf16.mxu0 0
    %1024 = vmatpush1.bf16.msra.mxu0 0
    %1025 = vmatprep.subr.bf16.mxu0 0
    %1026 = vmatpush1.bf16.msra.mxu0 0
    %1027 = vmatprep.subr.bf16.mxu0 0
    %1028 = vmatpush1.bf16.msra.mxu0 0
    %1029 = vmatprep.subr.bf16.mxu0 0
    %1030 = vmatpush1.bf16.msra.mxu0 0
    %1031 = vmatprep.subr.bf16.mxu0 0
    %1032 = vmatpush1.bf16.msra.mxu0 0
    %1033 = vmatprep.mubr.bf16.mxu0 0
    %1034 = vmatmul.mubr.bf16.gmra.mrb[0].mxu0 %v946
    %v1035 = vpop.f32.mrb[0].mxu0
    %v1036 = vadd.f32 0.0, %v1035
    %v1037 = vpop.f32.mrb[0].mxu0
    %v1038 = vadd.f32 0.0, %v1037
    %v1039 = vpop.f32.mrb[0].mxu0
    %v1040 = vpop.f32.mrb[0].mxu0
    %1041 = vdwg.mxu0
    %1042 = vrot.lane.b32.xlu0 %v995, 17
    %v1043 = vpop.permute.xlu0 %1042
    %1044 = vrot.lane.b32.xlu0 %v997, 17
    %v1045 = vpop.permute.xlu0 %1044
    %1046 = vrot.lane.b32.xlu0 %v1036, 17
    %v1047 = vpop.permute.xlu0 %1046
    %1048 = vrot.lane.b32.xlu0 %v1038, 17
    %v1049 = vpop.permute.xlu0 %1048
    %v1050 = vsel %vm579, %v1047, %v1049
    %v1051 = vsel %vm579, %v1045, %v1047
    %v1052 = vsel %vm579, %v1043, %v1045
    %v1053 = vsel %vm579, %v1049, %v1043
    %v1054 = vmul.f32 %v1053, %v587
    %v1055 = vmul.f32 %v1052, %v591
    %v1056 = vmul.f32 %v1051, %v595
    %v1057 = vmul.f32 %v1050, %v599
    %1058 = vrot.lane.b32.xlu0 %v995, 16
    %v1059 = vpop.permute.xlu0 %1058
    %1060 = vrot.lane.b32.xlu0 %v997, 16
    %v1061 = vpop.permute.xlu0 %1060
    %1062 = vrot.lane.b32.xlu0 %v1036, 16
    %v1063 = vpop.permute.xlu0 %1062
    %1064 = vrot.lane.b32.xlu0 %v1038, 16
    %v1065 = vpop.permute.xlu0 %1064
    %v1066 = vsel %vm612, %v1063, %v1065
    %v1067 = vsel %vm612, %v1061, %v1063
    %v1068 = vsel %vm612, %v1059, %v1061
    %v1069 = vsel %vm612, %v1065, %v1059
    %v1070 = vmul.f32 %v1069, %v620
    %v1071 = vmul.f32 %v1068, %v624
    %v1072 = vmul.f32 %v1067, %v628
    %v1073 = vmul.f32 %v1066, %v632
    %1074 = vrot.lane.b32.xlu0 %v995, 15
    %v1075 = vpop.permute.xlu0 %1074
    %1076 = vrot.lane.b32.xlu0 %v997, 15
    %v1077 = vpop.permute.xlu0 %1076
    %1078 = vrot.lane.b32.xlu0 %v1036, 15
    %v1079 = vpop.permute.xlu0 %1078
    %1080 = vrot.lane.b32.xlu0 %v1038, 15
    %v1081 = vpop.permute.xlu0 %1080
    %v1082 = vsel %vm645, %v1079, %v1081
    %v1083 = vsel %vm645, %v1077, %v1079
    %v1084 = vsel %vm645, %v1075, %v1077
    %v1085 = vsel %vm645, %v1081, %v1075
    %v1086 = vmul.f32 %v1085, %v653
    %v1087 = vmul.f32 %v1084, %v657
    %v1088 = vmul.f32 %v1083, %v661
    %v1089 = vmul.f32 %v1082, %v665
    %1090 = vrot.lane.b32.xlu0 %v995, 1
    %v1091 = vpop.permute.xlu0 %1090
    %1092 = vrot.lane.b32.xlu0 %v997, 1
    %v1093 = vpop.permute.xlu0 %1092
    %1094 = vrot.lane.b32.xlu0 %v1036, 1
    %v1095 = vpop.permute.xlu0 %1094
    %1096 = vrot.lane.b32.xlu0 %v1038, 1
    %v1097 = vpop.permute.xlu0 %1096
    %v1098 = vsel %vm678, %v1095, %v1097
    %v1099 = vsel %vm678, %v1093, %v1095
    %v1100 = vsel %vm678, %v1091, %v1093
    %v1101 = vsel %vm678, %v1097, %v1091
    %v1102 = vmul.f32 %v1101, %v686
    %v1103 = vmul.f32 %v1100, %v690
    %v1104 = vmul.f32 %v1099, %v694
    %v1105 = vmul.f32 %v1098, %v698
    %v1106 = vmul.f32 %v995, %v706
    %v1107 = vmul.f32 %v997, %v710
    %v1108 = vmul.f32 %v1036, %v714
    %v1109 = vmul.f32 %v1038, %v718
    %1110 = vrot.lane.b32.xlu0 %v995, 127
    %v1111 = vpop.permute.xlu0 %1110
    %1112 = vrot.lane.b32.xlu0 %v997, 127
    %v1113 = vpop.permute.xlu0 %1112
    %1114 = vrot.lane.b32.xlu0 %v1036, 127
    %v1115 = vpop.permute.xlu0 %1114
    %1116 = vrot.lane.b32.xlu0 %v1038, 127
    %v1117 = vpop.permute.xlu0 %1116
    %v1118 = vsel %vm737, %v1115, %v1117
    %v1119 = vsel %vm737, %v1113, %v1115
    %v1120 = vsel %vm737, %v1111, %v1113
    %v1121 = vsel %vm737, %v1117, %v1111
    %v1122 = vmul.f32 %v1120, %v745
    %v1123 = vmul.f32 %v1119, %v749
    %v1124 = vmul.f32 %v1118, %v753
    %v1125 = vmul.f32 %v1121, %v757
    %1126 = vrot.lane.b32.xlu0 %v995, 113
    %v1127 = vpop.permute.xlu0 %1126
    %1128 = vrot.lane.b32.xlu0 %v997, 113
    %v1129 = vpop.permute.xlu0 %1128
    %1130 = vrot.lane.b32.xlu0 %v1036, 113
    %v1131 = vpop.permute.xlu0 %1130
    %1132 = vrot.lane.b32.xlu0 %v1038, 113
    %v1133 = vpop.permute.xlu0 %1132
    %v1134 = vsel %vm770, %v1131, %v1133
    %v1135 = vsel %vm770, %v1129, %v1131
    %v1136 = vsel %vm770, %v1127, %v1129
    %v1137 = vsel %vm770, %v1133, %v1127
    %v1138 = vmul.f32 %v1136, %v778
    %v1139 = vmul.f32 %v1135, %v782
    %v1140 = vmul.f32 %v1134, %v786
    %v1141 = vmul.f32 %v1137, %v790
    %1142 = vrot.lane.b32.xlu0 %v995, 112
    %v1143 = vpop.permute.xlu0 %1142
    %1144 = vrot.lane.b32.xlu0 %v997, 112
    %v1145 = vpop.permute.xlu0 %1144
    %1146 = vrot.lane.b32.xlu0 %v1036, 112
    %v1147 = vpop.permute.xlu0 %1146
    %1148 = vrot.lane.b32.xlu0 %v1038, 112
    %v1149 = vpop.permute.xlu0 %1148
    %v1150 = vsel %vm803, %v1147, %v1149
    %v1151 = vsel %vm803, %v1145, %v1147
    %v1152 = vsel %vm803, %v1143, %v1145
    %v1153 = vsel %vm803, %v1149, %v1143
    %v1154 = vmul.f32 %v1152, %v811
    %v1155 = vmul.f32 %v1151, %v815
    %v1156 = vmul.f32 %v1150, %v819
    %v1157 = vmul.f32 %v1153, %v823
    %1158 = vrot.lane.b32.xlu0 %v995, 111
    %v1159 = vpop.permute.xlu0 %1158
    %1160 = vrot.lane.b32.xlu0 %v997, 111
    %v1161 = vpop.permute.xlu0 %1160
    %1162 = vrot.lane.b32.xlu0 %v1036, 111
    %v1163 = vpop.permute.xlu0 %1162
    %1164 = vrot.lane.b32.xlu0 %v1038, 111
    %v1165 = vpop.permute.xlu0 %1164
    %v1166 = vsel %vm836, %v1163, %v1165
    %v1167 = vsel %vm836, %v1161, %v1163
    %v1168 = vsel %vm836, %v1159, %v1161
    %v1169 = vsel %vm836, %v1165, %v1159
    %v1170 = vmul.f32 %v1168, %v844
    %v1171 = vmul.f32 %v1167, %v848
    %v1172 = vmul.f32 %v1166, %v852
    %v1173 = vmul.f32 %v1169, %v856
    %v1174 = vld [vmem:[%s7] sm:$0xf]
    %v1175 = vpack.c.bf16 %v1070, %v1054
    %v1176 = vpack.c.bf16 %v1071, %v1055
    %v1177 = vpack.c.bf16 %v1072, %v1056
    %v1178 = vpack.c.bf16 %v1073, %v1057
    %v1179 = vpack.c.bf16 %v1102, %v1086
    %v1180 = vpack.c.bf16 %v1103, %v1087
    %v1181 = vpack.c.bf16 %v1104, %v1088
    %v1182 = vpack.c.bf16 %v1105, %v1089
    %v1183 = vpack.c.bf16 %v1122, %v1106
    %v1184 = vpack.c.bf16 %v1123, %v1107
    %v1185 = vpack.c.bf16 %v1124, %v1108
    %v1186 = vpack.c.bf16 %v1125, %v1109
    %v1187 = vpack.c.bf16 %v1154, %v1138
    %v1188 = vpack.c.bf16 %v1155, %v1139
    %v1189 = vpack.c.bf16 %v1156, %v1140
    %v1190 = vpack.c.bf16 %v1157, %v1141
    %v1191 = vpack.c.bf16 %v1170, %v1170
    %v1192 = vpack.c.bf16 %v1171, %v1171
    %v1193 = vpack.c.bf16 %v1172, %v1172
    %v1194 = vpack.c.bf16 %v1173, %v1173
    %vm1195 = vcmask 588800
    %v1197 = vsel %vm1195, %v1174, 0
    %v1200 = vsel %vm107, %v1191, 0
    %v1203 = vsel %vm107, %v1192, 0
    %v1206 = vsel %vm107, %v1193, 0
    %v1209 = vsel %vm107, %v1194, 0
    %1211 = vmatprep.subr.bf16.mxu0 %v1176
    %1212 = vmatpush1.bf16.msra.mxu0 %v1175
    %1213 = vmatprep.subr.bf16.mxu0 %v1180
    %1214 = vmatpush1.bf16.msra.mxu0 %v1179
    %1215 = vmatprep.subr.bf16.mxu0 %v1184
    %1216 = vmatpush1.bf16.msra.mxu0 %v1183
    %1217 = vmatprep.subr.bf16.mxu0 %v1188
    %1218 = vmatpush1.bf16.msra.mxu0 %v1187
    %1219 = vmatprep.subr.bf16.mxu0 %v1203
    %1220 = vmatpush1.bf16.msra.mxu0 %v1200
    %1221 = vmatprep.subr.bf16.mxu0 0
    %1222 = vmatpush1.bf16.msra.mxu0 0
    %1223 = vmatprep.subr.bf16.mxu0 0
    %1224 = vmatpush1.bf16.msra.mxu0 0
    %1225 = vmatprep.subr.bf16.mxu0 0
    %1226 = vmatpush1.bf16.msra.mxu0 0
    %1227 = vmatprep.subr.bf16.mxu0 0
    %1228 = vmatpush1.bf16.msra.mxu0 0
    %1229 = vmatprep.subr.bf16.mxu0 0
    %1230 = vmatpush1.bf16.msra.mxu0 0
    %1231 = vmatprep.subr.bf16.mxu0 0
    %1232 = vmatpush1.bf16.msra.mxu0 0
    %1233 = vmatprep.subr.bf16.mxu0 0
    %1234 = vmatpush1.bf16.msra.mxu0 0
    %1235 = vmatprep.subr.bf16.mxu0 0
    %1236 = vmatpush1.bf16.msra.mxu0 0
    %1237 = vmatprep.subr.bf16.mxu0 0
    %1238 = vmatpush1.bf16.msra.mxu0 0
    %1239 = vmatprep.subr.bf16.mxu0 0
    %1240 = vmatpush1.bf16.msra.mxu0 0
    %1241 = vmatprep.subr.bf16.mxu0 0
    %1242 = vmatpush1.bf16.msra.mxu0 0
    %1243 = vmatprep.mubr.bf16.mxu0 0
    %1244 = vmatmul.mubr.bf16.gmra.mrb[0].mxu0 %v1197
    %v1245 = vpop.f32.mrb[0].mxu0
    %v1246 = vadd.f32 0.0, %v1245
    %v1247 = vpop.f32.mrb[0].mxu0
    %v1248 = vadd.f32 0.0, %v1247
    %v1249 = vpop.f32.mrb[0].mxu0
    %v1250 = vpop.f32.mrb[0].mxu0
    %1251 = vdwg.mxu0
    %1252 = vmatprep.subr.bf16.mxu0 %v1178
    %1253 = vmatpush1.bf16.msra.mxu0 %v1177
    %1254 = vmatprep.subr.bf16.mxu0 %v1182
    %1255 = vmatpush1.bf16.msra.mxu0 %v1181
    %1256 = vmatprep.subr.bf16.mxu0 %v1186
    %1257 = vmatpush1.bf16.msra.mxu0 %v1185
    %1258 = vmatprep.subr.bf16.mxu0 %v1190
    %1259 = vmatpush1.bf16.msra.mxu0 %v1189
    %1260 = vmatprep.subr.bf16.mxu0 %v1209
    %1261 = vmatpush1.bf16.msra.mxu0 %v1206
    %1262 = vmatprep.subr.bf16.mxu0 0
    %1263 = vmatpush1.bf16.msra.mxu0 0
    %1264 = vmatprep.subr.bf16.mxu0 0
    %1265 = vmatpush1.bf16.msra.mxu0 0
    %1266 = vmatprep.subr.bf16.mxu0 0
    %1267 = vmatpush1.bf16.msra.mxu0 0
    %1268 = vmatprep.subr.bf16.mxu0 0
    %1269 = vmatpush1.bf16.msra.mxu0 0
    %1270 = vmatprep.subr.bf16.mxu0 0
    %1271 = vmatpush1.bf16.msra.mxu0 0
    %1272 = vmatprep.subr.bf16.mxu0 0
    %1273 = vmatpush1.bf16.msra.mxu0 0
    %1274 = vmatprep.subr.bf16.mxu0 0
    %1275 = vmatpush1.bf16.msra.mxu0 0
    %1276 = vmatprep.subr.bf16.mxu0 0
    %1277 = vmatpush1.bf16.msra.mxu0 0
    %1278 = vmatprep.subr.bf16.mxu0 0
    %1279 = vmatpush1.bf16.msra.mxu0 0
    %1280 = vmatprep.subr.bf16.mxu0 0
    %1281 = vmatpush1.bf16.msra.mxu0 0
    %1282 = vmatprep.subr.bf16.mxu0 0
    %1283 = vmatpush1.bf16.msra.mxu0 0
    %1284 = vmatprep.mubr.bf16.mxu0 0
    %1285 = vmatmul.mubr.bf16.gmra.mrb[0].mxu0 %v1197
    %v1286 = vpop.f32.mrb[0].mxu0
    %v1287 = vadd.f32 0.0, %v1286
    %v1288 = vpop.f32.mrb[0].mxu0
    %v1289 = vadd.f32 0.0, %v1288
    %v1290 = vpop.f32.mrb[0].mxu0
    %v1291 = vpop.f32.mrb[0].mxu0
    %1292 = vdwg.mxu0
    %v1293 = vxor.u32 %v1246, 2147483648
    %v1294 = vxor.u32 %v1248, 2147483648
    %v1295 = vxor.u32 %v1287, 2147483648
    %v1296 = vxor.u32 %v1289, 2147483648
    %v1297 = vmul.f32 %v1293, 1.442695
    %v1298 = vpow.pop %v1297
    %v1299 = vmul.f32 %v1294, 1.442695
    %v1300 = vpow.pop %v1299
    %v1301 = vmul.f32 %v1295, 1.442695
    %v1302 = vpow.pop %v1301
    %v1303 = vmul.f32 %v1296, 1.442695
    %v1304 = vpow.pop %v1303
    %v1305 = vadd.f32 %v1298, 1.0
    %v1306 = vadd.f32 %v1300, 1.0
    %v1307 = vadd.f32 %v1302, 1.0
    %v1308 = vadd.f32 %v1304, 1.0
    %v1309 = vrcp.pop %v1305
    %v1310 = vmul.f32 1.0, %v1309
    %v1311 = vrcp.pop %v1306
    %v1312 = vmul.f32 1.0, %v1311
    %v1313 = vrcp.pop %v1307
    %v1314 = vmul.f32 1.0, %v1313
    %v1315 = vrcp.pop %v1308
    %v1316 = vmul.f32 1.0, %v1315
    %v1317 = vld [vmem:[#allocation4] sm:$0xff]
    %v1318 = vld [vmem:[#allocation4 + $0x8] sm:$0xff]
    %v1320 = vcombine.high %v1317, %v1317
    %1322 = vmatprep.subr.mxu0 %v1320
    %1323 = vmatpush1.xpose.msra.mxu0 %v1317
    %1324 = vmatprep.subr.mxu0 0.0
    %1325 = vmatpush1.xpose.msra.mxu0 0.0
    %1326 = vmatprep.subr.mxu0 0.0
    %1327 = vmatpush1.xpose.msra.mxu0 0.0
    %1328 = vmatprep.subr.mxu0 0.0
    %1329 = vmatpush1.xpose.msra.mxu0 0.0
    %1330 = vmatprep.subr.mxu0 0.0
    %1331 = vmatpush1.xpose.msra.mxu0 0.0
    %1332 = vmatprep.subr.mxu0 0.0
    %1333 = vmatpush1.xpose.msra.mxu0 0.0
    %1334 = vmatprep.subr.mxu0 0.0
    %1335 = vmatpush1.xpose.msra.mxu0 0.0
    %1336 = vmatprep.subr.mxu0 0.0
    %1337 = vmatpush1.xpose.msra.mxu0 0.0
    %1338 = vmatprep.subr.mxu0 0.0
    %1339 = vmatpush1.xpose.msra.mxu0 0.0
    %1340 = vmatprep.subr.mxu0 0.0
    %1341 = vmatpush1.xpose.msra.mxu0 0.0
    %1342 = vmatprep.subr.mxu0 0.0
    %1343 = vmatpush1.xpose.msra.mxu0 0.0
    %1344 = vmatprep.subr.mxu0 0.0
    %1345 = vmatpush1.xpose.msra.mxu0 0.0
    %1346 = vmatprep.subr.mxu0 0.0
    %1347 = vmatpush1.xpose.msra.mxu0 0.0
    %1348 = vmatprep.subr.mxu0 0.0
    %1349 = vmatpush1.xpose.msra.mxu0 0.0
    %1350 = vmatprep.subr.mxu0 0.0
    %1351 = vmatpush1.xpose.msra.mxu0 0.0
    %1352 = vmatprep.subr.mxu0 0.0
    %1353 = vmatpush1.xpose.msra.mxu0 0.0
    %1354 = vmatprep.subr.mxu0 0.0
    %1355 = vmatpush1.xpose.msra.mxu0 0.0
    %1356 = vmatprep.subr.mxu0 0.0
    %1357 = vmatpush1.xpose.msra.mxu0 0.0
    %1358 = vmatprep.subr.mxu0 0.0
    %1359 = vmatpush1.xpose.msra.mxu0 0.0
    %1360 = vmatprep.subr.mxu0 0.0
    %1361 = vmatpush1.xpose.msra.mxu0 0.0
    %1362 = vmatprep.subr.mxu0 0.0
    %1363 = vmatpush1.xpose.msra.mxu0 0.0
    %1364 = vmatprep.subr.mxu0 0.0
    %1365 = vmatpush1.xpose.msra.mxu0 0.0
    %1366 = vmatprep.subr.mxu0 0.0
    %1367 = vmatpush1.xpose.msra.mxu0 0.0
    %1368 = vmatprep.subr.mxu0 0.0
    %1369 = vmatpush1.xpose.msra.mxu0 0.0
    %1370 = vmatprep.subr.mxu0 0.0
    %1371 = vmatpush1.xpose.msra.mxu0 0.0
    %1372 = vmatprep.subr.mxu0 0.0
    %1373 = vmatpush1.xpose.msra.mxu0 0.0
    %1374 = vmatprep.subr.mxu0 0.0
    %1375 = vmatpush1.xpose.msra.mxu0 0.0
    %1376 = vmatprep.subr.mxu0 0.0
    %1377 = vmatpush1.xpose.msra.mxu0 0.0
    %1378 = vmatprep.subr.mxu0 0.0
    %1379 = vmatpush1.xpose.msra.mxu0 0.0
    %1380 = vmatprep.subr.mxu0 0.0
    %1381 = vmatpush1.xpose.msra.mxu0 0.0
    %1382 = vmatprep.subr.mxu0 0.0
    %1383 = vmatpush1.xpose.msra.mxu0 0.0
    %1384 = vmatprep.subr.mxu0 0.0
    %1385 = vmatpush1.xpose.msra.mxu0 0.0
    %1386 = vmatprep.mubr.f32.mxu0 %v1312
    %1387 = vmatmul.mubr.f32.gmra.mrb[0].mxu0 %v1310
    %v1388 = vpop.f32.mrb[0].mxu0
    %v1389 = vadd.f32 0.0, %v1388
    %v1390 = vpop.f32.mrb[0].mxu0
    %1391 = vdwg.mxu0
    %vm1392 = vcmask 31744
    %1393 = vst.msk [vmem:[%s8] sm:$0xff] %vm1392, %v1389
    %v1395 = vcombine.high %v1318, %v1318
    %1397 = vmatprep.subr.mxu0 %v1395
    %1398 = vmatpush1.xpose.msra.mxu0 %v1318
    %1399 = vmatprep.subr.mxu0 0.0
    %1400 = vmatpush1.xpose.msra.mxu0 0.0
    %1401 = vmatprep.subr.mxu0 0.0
    %1402 = vmatpush1.xpose.msra.mxu0 0.0
    %1403 = vmatprep.subr.mxu0 0.0
    %1404 = vmatpush1.xpose.msra.mxu0 0.0
    %1405 = vmatprep.subr.mxu0 0.0
    %1406 = vmatpush1.xpose.msra.mxu0 0.0
    %1407 = vmatprep.subr.mxu0 0.0
    %1408 = vmatpush1.xpose.msra.mxu0 0.0
    %1409 = vmatprep.subr.mxu0 0.0
    %1410 = vmatpush1.xpose.msra.mxu0 0.0
    %1411 = vmatprep.subr.mxu0 0.0
    %1412 = vmatpush1.xpose.msra.mxu0 0.0
    %1413 = vmatprep.subr.mxu0 0.0
    %1414 = vmatpush1.xpose.msra.mxu0 0.0
    %1415 = vmatprep.subr.mxu0 0.0
    %1416 = vmatpush1.xpose.msra.mxu0 0.0
    %1417 = vmatprep.subr.mxu0 0.0
    %1418 = vmatpush1.xpose.msra.mxu0 0.0
    %1419 = vmatprep.subr.mxu0 0.0
    %1420 = vmatpush1.xpose.msra.mxu0 0.0
    %1421 = vmatprep.subr.mxu0 0.0
    %1422 = vmatpush1.xpose.msra.mxu0 0.0
    %1423 = vmatprep.subr.mxu0 0.0
    %1424 = vmatpush1.xpose.msra.mxu0 0.0
    %1425 = vmatprep.subr.mxu0 0.0
    %1426 = vmatpush1.xpose.msra.mxu0 0.0
    %1427 = vmatprep.subr.mxu0 0.0
    %1428 = vmatpush1.xpose.msra.mxu0 0.0
    %1429 = vmatprep.subr.mxu0 0.0
    %1430 = vmatpush1.xpose.msra.mxu0 0.0
    %1431 = vmatprep.subr.mxu0 0.0
    %1432 = vmatpush1.xpose.msra.mxu0 0.0
    %1433 = vmatprep.subr.mxu0 0.0
    %1434 = vmatpush1.xpose.msra.mxu0 0.0
    %1435 = vmatprep.subr.mxu0 0.0
    %1436 = vmatpush1.xpose.msra.mxu0 0.0
    %1437 = vmatprep.subr.mxu0 0.0
    %1438 = vmatpush1.xpose.msra.mxu0 0.0
    %1439 = vmatprep.subr.mxu0 0.0
    %1440 = vmatpush1.xpose.msra.mxu0 0.0
    %1441 = vmatprep.subr.mxu0 0.0
    %1442 = vmatpush1.xpose.msra.mxu0 0.0
    %1443 = vmatprep.subr.mxu0 0.0
    %1444 = vmatpush1.xpose.msra.mxu0 0.0
    %1445 = vmatprep.subr.mxu0 0.0
    %1446 = vmatpush1.xpose.msra.mxu0 0.0
    %1447 = vmatprep.subr.mxu0 0.0
    %1448 = vmatpush1.xpose.msra.mxu0 0.0
    %1449 = vmatprep.subr.mxu0 0.0
    %1450 = vmatpush1.xpose.msra.mxu0 0.0
    %1451 = vmatprep.subr.mxu0 0.0
    %1452 = vmatpush1.xpose.msra.mxu0 0.0
    %1453 = vmatprep.subr.mxu0 0.0
    %1454 = vmatpush1.xpose.msra.mxu0 0.0
    %1455 = vmatprep.subr.mxu0 0.0
    %1456 = vmatpush1.xpose.msra.mxu0 0.0
    %1457 = vmatprep.subr.mxu0 0.0
    %1458 = vmatpush1.xpose.msra.mxu0 0.0
    %1459 = vmatprep.subr.mxu0 0.0
    %1460 = vmatpush1.xpose.msra.mxu0 0.0
    %1461 = vmatprep.mubr.f32.mxu0 %v1316
    %1462 = vmatmul.mubr.f32.gmra.mrb[0].mxu0 %v1314
    %v1463 = vpop.f32.mrb[0].mxu0
    %v1464 = vadd.f32 0.0, %v1463
    %v1465 = vpop.f32.mrb[0].mxu0
    %1466 = vdwg.mxu0
    %s1467 = scalar_lea.vmem %s8, 8
    %1468 = vst.msk [vmem:[%s1467] sm:$0xff] %vm1392, %v1464
    // Predicated region
    $region54: #{tpu_custom_call.1} parent=1 // pred_check
      _
    $region55: #{tpu_custom_call.1} parent=1 // pred_check_branch
      %1470 = sbr.rel (0) target = $region57
    $region56: #{tpu_custom_call.1} parent=1 // pred_region
      _
    $region57: #{tpu_custom_call.1} parent=1 // pred_fallthru
      _
    // Predicated region
    $region58: #{tpu_custom_call.1} parent=1 // pred_check
      _
    $region59: #{tpu_custom_call.1} parent=1 // pred_check_branch
      %1472 = sbr.rel (0) target = $region61
    $region60: #{tpu_custom_call.1} parent=1 // pred_region
      _
    $region61: #{tpu_custom_call.1} parent=1 // pred_fallthru
      _
    %1473 = vsyncpa [#allocation3], 1
    %1474 = vsyncpa [#allocation5], 1
    %1475 = vsyncpa [#allocation8], 1

</llo_original>
